<compile_context>
chip_gen: v7x
topology: tpu7x:2x2x1
jax: 0.10.0
libtpu: 0.0.40
codegen_flags: <defaults>
</compile_context>

<pallas_src>
import functools

import numpy as np
import jax
import jax.numpy as jnp
from jax.experimental import pallas as pl
from jax.experimental.pallas import tpu as pltpu

NUM_FLOWS = 4
NEG_SLOPE = 0.2
LOG_2PI = float(np.log(2.0 * np.pi))


def _leaky(a):
    return jnp.where(a > 0, a, NEG_SLOPE * a)


def _nf_kernel(x_ref, w1_ref, b1_ref, w2_ref, b2_ref, w3_ref, b3_ref,
               zs_ref, logp_ref, ld_ref, *, D, num_flows, mxu_dtype):
    """One batch tile: run all flows + prior log-prob. Zero in-kernel layout ops."""
    y = x_ref[...].astype(jnp.float32)                 # (tile_m, D), kernel layout, f32 state
    s_acc = jnp.zeros_like(y)                          # accumulated S over flows

    for f in range(num_flows):                         # flows are serial -> static unroll
        # fused s/t conditioner MLP: 3 matmuls per flow, bf16 operands, f32 accumulation
        h = _leaky(jnp.dot(y.astype(mxu_dtype), w1_ref[f],
                           preferred_element_type=jnp.float32) + b1_ref[f])
        h = _leaky(jnp.dot(h.astype(mxu_dtype), w2_ref[f],
                           preferred_element_type=jnp.float32) + b2_ref[f])
        st = jnp.dot(h.astype(mxu_dtype), w3_ref[f],
                     preferred_element_type=jnp.float32) + b3_ref[f]
        s_full = st[:, :D]                             # == 0 on copied coordinates
        t_full = st[:, D:]                             # == 0 on copied coordinates
        s_acc = s_acc + s_full
        y = jnp.exp(s_full) * y + t_full               # full-width masked coupling (f32)
        zs_ref[f] = y.astype(zs_ref.dtype)             # lane offset 0 for every flow

    # single cross-lane reductions at the end
    ld_ref[...] = jnp.sum(s_acc, axis=1, keepdims=True)
    logp_ref[...] = jnp.sum(-0.5 * (y * y) - 0.5 * LOG_2PI, axis=1, keepdims=True)


def make_params(key, D, nh):
    """Reference (unfused) per-flow s/t conditioner MLP weights, k=0 -> s, k=1 -> t."""
    half = D // 2
    ks = jax.random.split(key, 6)
    w1 = jax.random.normal(ks[0], (NUM_FLOWS, 2, half, nh), jnp.float32) / np.sqrt(half)
    b1 = 0.1 * jax.random.normal(ks[1], (NUM_FLOWS, 2, 1, nh), jnp.float32)
    w2 = jax.random.normal(ks[2], (NUM_FLOWS, 2, nh, nh), jnp.float32) / np.sqrt(nh)
    b2 = 0.1 * jax.random.normal(ks[3], (NUM_FLOWS, 2, 1, nh), jnp.float32)
    w3 = 0.1 * jax.random.normal(ks[4], (NUM_FLOWS, 2, nh, half), jnp.float32) / np.sqrt(nh)
    b3 = 0.1 * jax.random.normal(ks[5], (NUM_FLOWS, 2, 1, half), jnp.float32)
    return (w1, b1, w2, b2, w3, b3)


def build_kernel_params(params, D, weight_dtype=jnp.bfloat16):
    """Fuse each flow's s/t MLPs into one MLP and absorb the even/odd-split + concat
    permutations into the weight layout.  Call ONCE per parameter update (host repack;
    do not call per forward).

    Kernel invariant: the kernel state y satisfies y[:, j] == z[:, rho[j]] for the
    reference flow state z.  Per flow f, first-layer rows are scattered to the kernel
    positions of the conditioner coordinates and third-layer columns to the positions
    of the transformed coordinates (zeros elsewhere), so the in-kernel coupling
    y <- exp(S)*y + T is exact.  Returns stacked fused weights (W in `weight_dtype`,
    biases in f32) and, per flow, `unperm[f]` such that reference z_f = y_f[:, unperm[f]].
    """
    w1, b1, w2, b2, w3, b3 = [np.asarray(p, np.float32) for p in params]
    F, _, half, nh = w1.shape
    assert D == 2 * half
    ev, od = np.arange(0, D, 2), np.arange(1, D, 2)

    W1s, B1s, W2s, B2s, W3s, B3s = [], [], [], [], [], []
    unperm = []
    rho = np.arange(D)                       # kernel position j holds reference coord rho[j]
    for f in range(F):
        parity = f % 2
        A = ev if parity == 0 else od        # conditioner (copied) coords of the flow input
        B = od if parity == 0 else ev        # transformed coords
        pos = np.argsort(rho)                # pos[c] = kernel position holding coord c

        W1f = np.zeros((D, 2 * nh), np.float32)
        W1f[pos[A], :nh] = w1[f, 0]
        W1f[pos[A], nh:] = w1[f, 1]
        B1f = np.concatenate([b1[f, 0, 0], b1[f, 1, 0]])[None, :]

        W2f = np.zeros((2 * nh, 2 * nh), np.float32)       # block-diagonal hidden layer
        W2f[:nh, :nh] = w2[f, 0]
        W2f[nh:, nh:] = w2[f, 1]
        B2f = np.concatenate([b2[f, 0, 0], b2[f, 1, 0]])[None, :]

        W3f = np.zeros((2 * nh, 2 * D), np.float32)        # [S_full | T_full] producer
        B3f = np.zeros((1, 2 * D), np.float32)
        W3f[:nh, pos[B]] = w3[f, 0]
        B3f[0, pos[B]] = b3[f, 0, 0]
        W3f[nh:, D + pos[B]] = w3[f, 1]
        B3f[0, D + pos[B]] = b3[f, 1, 0]

        rho_new = np.empty(D, np.int64)                    # layout of this flow's output
        if parity == 0:
            rho_new[pos[A]] = np.arange(half)              # copied half  -> z[:half]
            rho_new[pos[B]] = half + np.arange(half)       # transformed  -> z[half:]
        else:
            rho_new[pos[B]] = np.arange(half)
            rho_new[pos[A]] = half + np.arange(half)
        rho = rho_new
        unperm.append(np.argsort(rho))                     # z = y[:, unperm]

        W1s.append(W1f); B1s.append(B1f); W2s.append(W2f)
        B2s.append(B2f); W3s.append(W3f); B3s.append(B3f)

    as_w = lambda xs: jnp.asarray(np.stack(xs), dtype=weight_dtype)
    as_b = lambda xs: jnp.asarray(np.stack(xs), dtype=jnp.float32)
    kparams = (as_w(W1s), as_b(B1s), as_w(W2s), as_b(B2s), as_w(W3s), as_b(B3s))
    return kparams, unperm


def _pick_tile_m(m, tile_m):
    tile_m = min(tile_m, m)
    if m > 8:
        # guarantee >= 2 grid steps (v7x has 2 TCs; "parallel" shards the grid axis),
        # keep the tile a multiple of 8 sublanes.
        half_tile = ((m + 1) // 2 + 7) // 8 * 8
        tile_m = min(tile_m, half_tile)
    return tile_m


def _vmem_limit_bytes(tile_m, D, nh, kparams, zs_itemsize):
    w_bytes = sum(int(np.prod(p.shape)) * p.dtype.itemsize for p in kparams)
    io_bytes = tile_m * D * 4 + NUM_FLOWS * tile_m * D * zs_itemsize + 2 * tile_m * 4
    live = tile_m * (2 * D + 4 * nh + 4 * D) * 4           # y, s_acc, h, st in f32
    need = 2 * (w_bytes + io_bytes) + live + (4 << 20)     # double buffers + slack
    # Above the scoped defaults (16 MiB v5e / 32 MiB v6e-v7x), under v7x's 64 MiB VMEM.
    return int(min(max(need, 32 << 20), 48 << 20))


def nf_model_forward(x, kparams, unperm, *, tile_m=512, zs_dtype=jnp.bfloat16):
    """Returns (zs list of len NUM_FLOWS+1, prior_logprob (m,), log_det (m,)).

    `kparams, unperm = build_kernel_params(params, D)` must be computed once outside
    (per parameter update).  This function is jax.jit-compatible.
    """
    m, D = x.shape
    assert D % 2 == 0, "affine half flows require an even feature dimension"
    nh = kparams[2].shape[1] // 2
    zs_itemsize = jnp.dtype(zs_dtype).itemsize

    tile_m = _pick_tile_m(m, tile_m)
    grid = (pl.cdiv(m, tile_m),)

    row_spec = pl.BlockSpec((tile_m, D), lambda i: (i, 0))
    # weights: full-array blocks with a constant index_map -> stay VMEM-resident
    const_spec = lambda p: pl.BlockSpec(p.shape, lambda i: (0,) * p.ndim)

    flops = 2 * m * NUM_FLOWS * (D * (2 * nh) + (2 * nh) * (2 * nh) + (2 * nh) * (2 * D))
    transcendentals = m * NUM_FLOWS * D
    bytes_accessed = (m * D * x.dtype.itemsize
                      + sum(int(np.prod(p.shape)) * p.dtype.itemsize for p in kparams)
                      + NUM_FLOWS * m * D * zs_itemsize + 2 * m * 4)

    kernel = functools.partial(_nf_kernel, D=D, num_flows=NUM_FLOWS,
                               mxu_dtype=kparams[0].dtype)
    zs_flat, logp, ld = pl.pallas_call(
        kernel,
        grid=grid,
        in_specs=[row_spec] + [const_spec(p) for p in kparams],
        out_specs=(pl.BlockSpec((NUM_FLOWS, tile_m, D), lambda i: (0, i, 0)),
                   pl.BlockSpec((tile_m, 1), lambda i: (i, 0)),
                   pl.BlockSpec((tile_m, 1), lambda i: (i, 0))),
        out_shape=(jax.ShapeDtypeStruct((NUM_FLOWS, m, D), zs_dtype),
                   jax.ShapeDtypeStruct((m, 1), jnp.float32),
                   jax.ShapeDtypeStruct((m, 1), jnp.float32)),
        compiler_params=pltpu.CompilerParams(
            dimension_semantics=("parallel",),
            vmem_limit_bytes=_vmem_limit_bytes(tile_m, D, nh, kparams, zs_itemsize)),
        cost_estimate=pl.CostEstimate(flops=int(flops),
                                      transcendentals=int(transcendentals),
                                      bytes_accessed=int(bytes_accessed)),
    )(x, *kparams)

    zs = [x]                                               # zs[0] is the input itself
    for f in range(NUM_FLOWS):
        zs.append(zs_flat[f][:, unperm[f]])                # one cheap de-permute outside
    return zs, logp[:, 0], ld[:, 0]


def reference_forward(x, params):
    """Pure-JAX f32 reference mirroring the PyTorch semantics (even/odd split per flow)."""
    w1, b1, w2, b2, w3, b3 = params
    m, _ = x.shape
    zs = [x]
    log_det = jnp.zeros((m,), jnp.float32)
    for f in range(NUM_FLOWS):
        parity = f % 2
        x0, x1 = x[:, 0::2], x[:, 1::2]
        if parity:
            x0, x1 = x1, x0

        def mlp(h, k):
            a = h @ w1[f, k] + b1[f, k]
            a = jnp.where(a > 0, a, NEG_SLOPE * a)
            a = a @ w2[f, k] + b2[f, k]
            a = jnp.where(a > 0, a, NEG_SLOPE * a)
            return a @ w3[f, k] + b3[f, k]

        s, t = mlp(x0, 0), mlp(x0, 1)
        z0, z1 = x0, jnp.exp(s) * x1 + t
        if parity:
            z0, z1 = z1, z0
        z = jnp.concatenate([z0, z1], axis=1)
        log_det = log_det + jnp.sum(s, axis=1)
        zs.append(z)
        x = z
    prior_logprob = jnp.sum(-0.5 * x * x - 0.5 * LOG_2PI, axis=1)
    return zs, prior_logprob, log_det


if __name__ == "__main__":
    m, D, nh = 16, 8, 32
    key = jax.random.PRNGKey(0)
    kx, kp = jax.random.split(key)
    x = jax.random.normal(kx, (m, D), jnp.float32)
    params = make_params(kp, D, nh)

    # Host-side weight fusion / permutation absorption: once per parameter update.
    kparams, unperm = build_kernel_params(params, D)

    fwd = jax.jit(lambda xx, kp_: nf_model_forward(xx, kp_, unperm))
    zs, prior_logprob, log_det = fwd(x, kparams)
    jax.block_until_ready((zs, prior_logprob, log_det))

    # bf16 MXU operands + bf16 zs output -> loosened tolerances vs the f32 reference.
    to_np = lambda a: np.asarray(jnp.asarray(a, jnp.float32))
    zs_r, lp_r, ld_r = reference_forward(x, params)
    for a, b in zip(zs, zs_r):
        np.testing.assert_allclose(to_np(a), to_np(b), rtol=5e-2, atol=5e-2)
    np.testing.assert_allclose(to_np(prior_logprob), to_np(lp_r), rtol=5e-2, atol=1e-1)
    np.testing.assert_allclose(to_np(log_det), to_np(ld_r), rtol=5e-2, atol=1e-1)
    print("KERNEL_OK")
</pallas_src>

<mosaic_0001>
module attributes {stable_mosaic.version = 11 : i64} {
  func.func @_nf_kernel(%arg0: i32, %arg1: memref<8x8xf32, #tpu.memory_space<vmem>>, %arg2: memref<4x8x64xbf16, #tpu.memory_space<vmem>>, %arg3: memref<4x1x64xf32, #tpu.memory_space<vmem>>, %arg4: memref<4x64x64xbf16, #tpu.memory_space<vmem>>, %arg5: memref<4x1x64xf32, #tpu.memory_space<vmem>>, %arg6: memref<4x64x16xbf16, #tpu.memory_space<vmem>>, %arg7: memref<4x1x16xf32, #tpu.memory_space<vmem>>, %arg8: memref<4x8x8xbf16, #tpu.memory_space<vmem>>, %arg9: memref<8x1xf32, #tpu.memory_space<vmem>>, %arg10: memref<8x1xf32, #tpu.memory_space<vmem>>) attributes {dimension_semantics = [#tpu.dimension_semantics<parallel>], iteration_bounds = array<i64: 2>, scalar_prefetch = 0 : i64, scratch_operands = 0 : i64, tpu.core_type = #tpu.core_type<tc>, window_params = [{transform_indices = @transform_0, window_bounds = array<i64: 8, 8>}, {pipeline_mode = #tpu.pipeline_mode<synchronous>, transform_indices = @transform_1, window_bounds = array<i64: 4, 8, 64>}, {pipeline_mode = #tpu.pipeline_mode<synchronous>, transform_indices = @transform_2, window_bounds = array<i64: 4, 1, 64>}, {pipeline_mode = #tpu.pipeline_mode<synchronous>, transform_indices = @transform_3, window_bounds = array<i64: 4, 64, 64>}, {pipeline_mode = #tpu.pipeline_mode<synchronous>, transform_indices = @transform_4, window_bounds = array<i64: 4, 1, 64>}, {pipeline_mode = #tpu.pipeline_mode<synchronous>, transform_indices = @transform_5, window_bounds = array<i64: 4, 64, 16>}, {pipeline_mode = #tpu.pipeline_mode<synchronous>, transform_indices = @transform_6, window_bounds = array<i64: 4, 1, 16>}, {transform_indices = @transform_7, window_bounds = array<i64: 4, 8, 8>}, {transform_indices = @transform_8, window_bounds = array<i64: 8, 1>}, {transform_indices = @transform_9, window_bounds = array<i64: 8, 1>}]} {
    %c0 = arith.constant 0 : index
    %c0_0 = arith.constant 0 : index
    %0 = vector.load %arg1[%c0, %c0_0] : memref<8x8xf32, #tpu.memory_space<vmem>>, vector<8x8xf32>
    %cst = arith.constant 0.000000e+00 : f32
    %1 = vector.broadcast %cst : f32 to vector<8x8xf32>
    %2 = arith.truncf %0 : vector<8x8xf32> to vector<8x8xbf16>
    %c0_1 = arith.constant 0 : index
    %c0_2 = arith.constant 0 : index
    %c0_3 = arith.constant 0 : index
    %3 = vector.load %arg2[%c0_1, %c0_2, %c0_3] : memref<4x8x64xbf16, #tpu.memory_space<vmem>>, vector<1x8x64xbf16>
    %4 = vector.shape_cast %3 : vector<1x8x64xbf16> to vector<8x64xbf16>
    %cst_4 = arith.constant dense<0.000000e+00> : vector<8x64xf32>
    %5 = tpu.matmul %2, %4, %cst_4 {dimension_numbers = #tpu.dot_dimension_numbers<[1], [0], [0], [1], [0, 0, 1, 1], [], []>} : vector<8x8xbf16>, vector<8x64xbf16>, vector<8x64xf32> -> vector<8x64xf32>
    %c0_5 = arith.constant 0 : index
    %c0_6 = arith.constant 0 : index
    %c0_7 = arith.constant 0 : index
    %6 = vector.load %arg3[%c0_5, %c0_6, %c0_7] : memref<4x1x64xf32, #tpu.memory_space<vmem>>, vector<1x1x64xf32>
    %7 = vector.shape_cast %6 : vector<1x1x64xf32> to vector<1x64xf32>
    %8 = vector.broadcast %7 : vector<1x64xf32> to vector<8x64xf32>
    %9 = arith.addf %5, %8 : vector<8x64xf32>
    %cst_8 = arith.constant 0.000000e+00 : f32
    %10 = vector.broadcast %cst_8 : f32 to vector<8x64xf32>
    %11 = arith.cmpf ogt, %9, %10 : vector<8x64xf32>
    %cst_9 = arith.constant 2.000000e-01 : f32
    %12 = vector.broadcast %cst_9 : f32 to vector<8x64xf32>
    %13 = arith.mulf %12, %9 : vector<8x64xf32>
    %14 = arith.select %11, %9, %13 : vector<8x64xi1>, vector<8x64xf32>
    %15 = arith.truncf %14 : vector<8x64xf32> to vector<8x64xbf16>
    %c0_10 = arith.constant 0 : index
    %c0_11 = arith.constant 0 : index
    %c0_12 = arith.constant 0 : index
    %16 = vector.load %arg4[%c0_10, %c0_11, %c0_12] : memref<4x64x64xbf16, #tpu.memory_space<vmem>>, vector<1x64x64xbf16>
    %17 = vector.shape_cast %16 : vector<1x64x64xbf16> to vector<64x64xbf16>
    %cst_13 = arith.constant dense<0.000000e+00> : vector<8x64xf32>
    %18 = tpu.matmul %15, %17, %cst_13 {dimension_numbers = #tpu.dot_dimension_numbers<[1], [0], [0], [1], [0, 0, 1, 1], [], []>} : vector<8x64xbf16>, vector<64x64xbf16>, vector<8x64xf32> -> vector<8x64xf32>
    %c0_14 = arith.constant 0 : index
    %c0_15 = arith.constant 0 : index
    %c0_16 = arith.constant 0 : index
    %19 = vector.load %arg5[%c0_14, %c0_15, %c0_16] : memref<4x1x64xf32, #tpu.memory_space<vmem>>, vector<1x1x64xf32>
    %20 = vector.shape_cast %19 : vector<1x1x64xf32> to vector<1x64xf32>
    %21 = vector.broadcast %20 : vector<1x64xf32> to vector<8x64xf32>
    %22 = arith.addf %18, %21 : vector<8x64xf32>
    %cst_17 = arith.constant 0.000000e+00 : f32
    %23 = vector.broadcast %cst_17 : f32 to vector<8x64xf32>
    %24 = arith.cmpf ogt, %22, %23 : vector<8x64xf32>
    %cst_18 = arith.constant 2.000000e-01 : f32
    %25 = vector.broadcast %cst_18 : f32 to vector<8x64xf32>
    %26 = arith.mulf %25, %22 : vector<8x64xf32>
    %27 = arith.select %24, %22, %26 : vector<8x64xi1>, vector<8x64xf32>
    %28 = arith.truncf %27 : vector<8x64xf32> to vector<8x64xbf16>
    %c0_19 = arith.constant 0 : index
    %c0_20 = arith.constant 0 : index
    %c0_21 = arith.constant 0 : index
    %29 = vector.load %arg6[%c0_19, %c0_20, %c0_21] : memref<4x64x16xbf16, #tpu.memory_space<vmem>>, vector<1x64x16xbf16>
    %30 = vector.shape_cast %29 : vector<1x64x16xbf16> to vector<64x16xbf16>
    %cst_22 = arith.constant dense<0.000000e+00> : vector<8x16xf32>
    %31 = tpu.matmul %28, %30, %cst_22 {dimension_numbers = #tpu.dot_dimension_numbers<[1], [0], [0], [1], [0, 0, 1, 1], [], []>} : vector<8x64xbf16>, vector<64x16xbf16>, vector<8x16xf32> -> vector<8x16xf32>
    %c0_23 = arith.constant 0 : index
    %c0_24 = arith.constant 0 : index
    %c0_25 = arith.constant 0 : index
    %32 = vector.load %arg7[%c0_23, %c0_24, %c0_25] : memref<4x1x16xf32, #tpu.memory_space<vmem>>, vector<1x1x16xf32>
    %33 = vector.shape_cast %32 : vector<1x1x16xf32> to vector<1x16xf32>
    %34 = vector.broadcast %33 : vector<1x16xf32> to vector<8x16xf32>
    %35 = arith.addf %31, %34 : vector<8x16xf32>
    %36 = vector.extract_strided_slice %35 {offsets = [0, 0], sizes = [8, 8], strides = [1, 1]} : vector<8x16xf32> to vector<8x8xf32>
    %37 = vector.extract_strided_slice %35 {offsets = [0, 8], sizes = [8, 8], strides = [1, 1]} : vector<8x16xf32> to vector<8x8xf32>
    %38 = arith.addf %1, %36 : vector<8x8xf32>
    %39 = math.exp %36 : vector<8x8xf32>
    %40 = arith.mulf %39, %0 : vector<8x8xf32>
    %41 = arith.addf %40, %37 : vector<8x8xf32>
    %42 = arith.truncf %41 : vector<8x8xf32> to vector<8x8xbf16>
    %c0_26 = arith.constant 0 : index
    %c0_27 = arith.constant 0 : index
    %c0_28 = arith.constant 0 : index
    %43 = vector.load %arg8[%c0_26, %c0_27, %c0_28] : memref<4x8x8xbf16, #tpu.memory_space<vmem>>, vector<1x8x8xbf16>
    %44 = vector.shape_cast %43 : vector<1x8x8xbf16> to vector<8x8xbf16>
    %45 = vector.shape_cast %42 : vector<8x8xbf16> to vector<1x8x8xbf16>
    tpu.vector_store %arg8[%c0_26, %c0_27, %c0_28], %45 {strides = array<i32>} : memref<4x8x8xbf16, #tpu.memory_space<vmem>>, vector<1x8x8xbf16>,
    %46 = arith.truncf %41 : vector<8x8xf32> to vector<8x8xbf16>
    %c1 = arith.constant 1 : index
    %c0_29 = arith.constant 0 : index
    %c0_30 = arith.constant 0 : index
    %47 = vector.load %arg2[%c1, %c0_29, %c0_30] : memref<4x8x64xbf16, #tpu.memory_space<vmem>>, vector<1x8x64xbf16>
    %48 = vector.shape_cast %47 : vector<1x8x64xbf16> to vector<8x64xbf16>
    %cst_31 = arith.constant dense<0.000000e+00> : vector<8x64xf32>
    %49 = tpu.matmul %46, %48, %cst_31 {dimension_numbers = #tpu.dot_dimension_numbers<[1], [0], [0], [1], [0, 0, 1, 1], [], []>} : vector<8x8xbf16>, vector<8x64xbf16>, vector<8x64xf32> -> vector<8x64xf32>
    %c1_32 = arith.constant 1 : index
    %c0_33 = arith.constant 0 : index
    %c0_34 = arith.constant 0 : index
    %50 = vector.load %arg3[%c1_32, %c0_33, %c0_34] : memref<4x1x64xf32, #tpu.memory_space<vmem>>, vector<1x1x64xf32>
    %51 = vector.shape_cast %50 : vector<1x1x64xf32> to vector<1x64xf32>
    %52 = vector.broadcast %51 : vector<1x64xf32> to vector<8x64xf32>
    %53 = arith.addf %49, %52 : vector<8x64xf32>
    %cst_35 = arith.constant 0.000000e+00 : f32
    %54 = vector.broadcast %cst_35 : f32 to vector<8x64xf32>
    %55 = arith.cmpf ogt, %53, %54 : vector<8x64xf32>
    %cst_36 = arith.constant 2.000000e-01 : f32
    %56 = vector.broadcast %cst_36 : f32 to vector<8x64xf32>
    %57 = arith.mulf %56, %53 : vector<8x64xf32>
    %58 = arith.select %55, %53, %57 : vector<8x64xi1>, vector<8x64xf32>
    %59 = arith.truncf %58 : vector<8x64xf32> to vector<8x64xbf16>
    %c1_37 = arith.constant 1 : index
    %c0_38 = arith.constant 0 : index
    %c0_39 = arith.constant 0 : index
    %60 = vector.load %arg4[%c1_37, %c0_38, %c0_39] : memref<4x64x64xbf16, #tpu.memory_space<vmem>>, vector<1x64x64xbf16>
    %61 = vector.shape_cast %60 : vector<1x64x64xbf16> to vector<64x64xbf16>
    %cst_40 = arith.constant dense<0.000000e+00> : vector<8x64xf32>
    %62 = tpu.matmul %59, %61, %cst_40 {dimension_numbers = #tpu.dot_dimension_numbers<[1], [0], [0], [1], [0, 0, 1, 1], [], []>} : vector<8x64xbf16>, vector<64x64xbf16>, vector<8x64xf32> -> vector<8x64xf32>
    %c1_41 = arith.constant 1 : index
    %c0_42 = arith.constant 0 : index
    %c0_43 = arith.constant 0 : index
    %63 = vector.load %arg5[%c1_41, %c0_42, %c0_43] : memref<4x1x64xf32, #tpu.memory_space<vmem>>, vector<1x1x64xf32>
    %64 = vector.shape_cast %63 : vector<1x1x64xf32> to vector<1x64xf32>
    %65 = vector.broadcast %64 : vector<1x64xf32> to vector<8x64xf32>
    %66 = arith.addf %62, %65 : vector<8x64xf32>
    %cst_44 = arith.constant 0.000000e+00 : f32
    %67 = vector.broadcast %cst_44 : f32 to vector<8x64xf32>
    %68 = arith.cmpf ogt, %66, %67 : vector<8x64xf32>
    %cst_45 = arith.constant 2.000000e-01 : f32
    %69 = vector.broadcast %cst_45 : f32 to vector<8x64xf32>
    %70 = arith.mulf %69, %66 : vector<8x64xf32>
    %71 = arith.select %68, %66, %70 : vector<8x64xi1>, vector<8x64xf32>
    %72 = arith.truncf %71 : vector<8x64xf32> to vector<8x64xbf16>
    %c1_46 = arith.constant 1 : index
    %c0_47 = arith.constant 0 : index
    %c0_48 = arith.constant 0 : index
    %73 = vector.load %arg6[%c1_46, %c0_47, %c0_48] : memref<4x64x16xbf16, #tpu.memory_space<vmem>>, vector<1x64x16xbf16>
    %74 = vector.shape_cast %73 : vector<1x64x16xbf16> to vector<64x16xbf16>
    %cst_49 = arith.constant dense<0.000000e+00> : vector<8x16xf32>
    %75 = tpu.matmul %72, %74, %cst_49 {dimension_numbers = #tpu.dot_dimension_numbers<[1], [0], [0], [1], [0, 0, 1, 1], [], []>} : vector<8x64xbf16>, vector<64x16xbf16>, vector<8x16xf32> -> vector<8x16xf32>
    %c1_50 = arith.constant 1 : index
    %c0_51 = arith.constant 0 : index
    %c0_52 = arith.constant 0 : index
    %76 = vector.load %arg7[%c1_50, %c0_51, %c0_52] : memref<4x1x16xf32, #tpu.memory_space<vmem>>, vector<1x1x16xf32>
    %77 = vector.shape_cast %76 : vector<1x1x16xf32> to vector<1x16xf32>
    %78 = vector.broadcast %77 : vector<1x16xf32> to vector<8x16xf32>
    %79 = arith.addf %75, %78 : vector<8x16xf32>
    %80 = vector.extract_strided_slice %79 {offsets = [0, 0], sizes = [8, 8], strides = [1, 1]} : vector<8x16xf32> to vector<8x8xf32>
    %81 = vector.extract_strided_slice %79 {offsets = [0, 8], sizes = [8, 8], strides = [1, 1]} : vector<8x16xf32> to vector<8x8xf32>
    %82 = arith.addf %38, %80 : vector<8x8xf32>
    %83 = math.exp %80 : vector<8x8xf32>
    %84 = arith.mulf %83, %41 : vector<8x8xf32>
    %85 = arith.addf %84, %81 : vector<8x8xf32>
    %86 = arith.truncf %85 : vector<8x8xf32> to vector<8x8xbf16>
    %c1_53 = arith.constant 1 : index
    %c0_54 = arith.constant 0 : index
    %c0_55 = arith.constant 0 : index
    %87 = vector.load %arg8[%c1_53, %c0_54, %c0_55] : memref<4x8x8xbf16, #tpu.memory_space<vmem>>, vector<1x8x8xbf16>
    %88 = vector.shape_cast %87 : vector<1x8x8xbf16> to vector<8x8xbf16>
    %89 = vector.shape_cast %86 : vector<8x8xbf16> to vector<1x8x8xbf16>
    tpu.vector_store %arg8[%c1_53, %c0_54, %c0_55], %89 {strides = array<i32>} : memref<4x8x8xbf16, #tpu.memory_space<vmem>>, vector<1x8x8xbf16>,
    %90 = arith.truncf %85 : vector<8x8xf32> to vector<8x8xbf16>
    %c2 = arith.constant 2 : index
    %c0_56 = arith.constant 0 : index
    %c0_57 = arith.constant 0 : index
    %91 = vector.load %arg2[%c2, %c0_56, %c0_57] : memref<4x8x64xbf16, #tpu.memory_space<vmem>>, vector<1x8x64xbf16>
    %92 = vector.shape_cast %91 : vector<1x8x64xbf16> to vector<8x64xbf16>
    %cst_58 = arith.constant dense<0.000000e+00> : vector<8x64xf32>
    %93 = tpu.matmul %90, %92, %cst_58 {dimension_numbers = #tpu.dot_dimension_numbers<[1], [0], [0], [1], [0, 0, 1, 1], [], []>} : vector<8x8xbf16>, vector<8x64xbf16>, vector<8x64xf32> -> vector<8x64xf32>
    %c2_59 = arith.constant 2 : index
    %c0_60 = arith.constant 0 : index
    %c0_61 = arith.constant 0 : index
    %94 = vector.load %arg3[%c2_59, %c0_60, %c0_61] : memref<4x1x64xf32, #tpu.memory_space<vmem>>, vector<1x1x64xf32>
    %95 = vector.shape_cast %94 : vector<1x1x64xf32> to vector<1x64xf32>
    %96 = vector.broadcast %95 : vector<1x64xf32> to vector<8x64xf32>
    %97 = arith.addf %93, %96 : vector<8x64xf32>
    %cst_62 = arith.constant 0.000000e+00 : f32
    %98 = vector.broadcast %cst_62 : f32 to vector<8x64xf32>
    %99 = arith.cmpf ogt, %97, %98 : vector<8x64xf32>
    %cst_63 = arith.constant 2.000000e-01 : f32
    %100 = vector.broadcast %cst_63 : f32 to vector<8x64xf32>
    %101 = arith.mulf %100, %97 : vector<8x64xf32>
    %102 = arith.select %99, %97, %101 : vector<8x64xi1>, vector<8x64xf32>
    %103 = arith.truncf %102 : vector<8x64xf32> to vector<8x64xbf16>
    %c2_64 = arith.constant 2 : index
    %c0_65 = arith.constant 0 : index
    %c0_66 = arith.constant 0 : index
    %104 = vector.load %arg4[%c2_64, %c0_65, %c0_66] : memref<4x64x64xbf16, #tpu.memory_space<vmem>>, vector<1x64x64xbf16>
    %105 = vector.shape_cast %104 : vector<1x64x64xbf16> to vector<64x64xbf16>
    %cst_67 = arith.constant dense<0.000000e+00> : vector<8x64xf32>
    %106 = tpu.matmul %103, %105, %cst_67 {dimension_numbers = #tpu.dot_dimension_numbers<[1], [0], [0], [1], [0, 0, 1, 1], [], []>} : vector<8x64xbf16>, vector<64x64xbf16>, vector<8x64xf32> -> vector<8x64xf32>
    %c2_68 = arith.constant 2 : index
    %c0_69 = arith.constant 0 : index
    %c0_70 = arith.constant 0 : index
    %107 = vector.load %arg5[%c2_68, %c0_69, %c0_70] : memref<4x1x64xf32, #tpu.memory_space<vmem>>, vector<1x1x64xf32>
    %108 = vector.shape_cast %107 : vector<1x1x64xf32> to vector<1x64xf32>
    %109 = vector.broadcast %108 : vector<1x64xf32> to vector<8x64xf32>
    %110 = arith.addf %106, %109 : vector<8x64xf32>
    %cst_71 = arith.constant 0.000000e+00 : f32
    %111 = vector.broadcast %cst_71 : f32 to vector<8x64xf32>
    %112 = arith.cmpf ogt, %110, %111 : vector<8x64xf32>
    %cst_72 = arith.constant 2.000000e-01 : f32
    %113 = vector.broadcast %cst_72 : f32 to vector<8x64xf32>
    %114 = arith.mulf %113, %110 : vector<8x64xf32>
    %115 = arith.select %112, %110, %114 : vector<8x64xi1>, vector<8x64xf32>
    %116 = arith.truncf %115 : vector<8x64xf32> to vector<8x64xbf16>
    %c2_73 = arith.constant 2 : index
    %c0_74 = arith.constant 0 : index
    %c0_75 = arith.constant 0 : index
    %117 = vector.load %arg6[%c2_73, %c0_74, %c0_75] : memref<4x64x16xbf16, #tpu.memory_space<vmem>>, vector<1x64x16xbf16>
    %118 = vector.shape_cast %117 : vector<1x64x16xbf16> to vector<64x16xbf16>
    %cst_76 = arith.constant dense<0.000000e+00> : vector<8x16xf32>
    %119 = tpu.matmul %116, %118, %cst_76 {dimension_numbers = #tpu.dot_dimension_numbers<[1], [0], [0], [1], [0, 0, 1, 1], [], []>} : vector<8x64xbf16>, vector<64x16xbf16>, vector<8x16xf32> -> vector<8x16xf32>
    %c2_77 = arith.constant 2 : index
    %c0_78 = arith.constant 0 : index
    %c0_79 = arith.constant 0 : index
    %120 = vector.load %arg7[%c2_77, %c0_78, %c0_79] : memref<4x1x16xf32, #tpu.memory_space<vmem>>, vector<1x1x16xf32>
    %121 = vector.shape_cast %120 : vector<1x1x16xf32> to vector<1x16xf32>
    %122 = vector.broadcast %121 : vector<1x16xf32> to vector<8x16xf32>
    %123 = arith.addf %119, %122 : vector<8x16xf32>
    %124 = vector.extract_strided_slice %123 {offsets = [0, 0], sizes = [8, 8], strides = [1, 1]} : vector<8x16xf32> to vector<8x8xf32>
    %125 = vector.extract_strided_slice %123 {offsets = [0, 8], sizes = [8, 8], strides = [1, 1]} : vector<8x16xf32> to vector<8x8xf32>
    %126 = arith.addf %82, %124 : vector<8x8xf32>
    %127 = math.exp %124 : vector<8x8xf32>
    %128 = arith.mulf %127, %85 : vector<8x8xf32>
    %129 = arith.addf %128, %125 : vector<8x8xf32>
    %130 = arith.truncf %129 : vector<8x8xf32> to vector<8x8xbf16>
    %c2_80 = arith.constant 2 : index
    %c0_81 = arith.constant 0 : index
    %c0_82 = arith.constant 0 : index
    %131 = vector.load %arg8[%c2_80, %c0_81, %c0_82] : memref<4x8x8xbf16, #tpu.memory_space<vmem>>, vector<1x8x8xbf16>
    %132 = vector.shape_cast %131 : vector<1x8x8xbf16> to vector<8x8xbf16>
    %133 = vector.shape_cast %130 : vector<8x8xbf16> to vector<1x8x8xbf16>
    tpu.vector_store %arg8[%c2_80, %c0_81, %c0_82], %133 {strides = array<i32>} : memref<4x8x8xbf16, #tpu.memory_space<vmem>>, vector<1x8x8xbf16>,
    %134 = arith.truncf %129 : vector<8x8xf32> to vector<8x8xbf16>
    %c3 = arith.constant 3 : index
    %c0_83 = arith.constant 0 : index
    %c0_84 = arith.constant 0 : index
    %135 = vector.load %arg2[%c3, %c0_83, %c0_84] : memref<4x8x64xbf16, #tpu.memory_space<vmem>>, vector<1x8x64xbf16>
    %136 = vector.shape_cast %135 : vector<1x8x64xbf16> to vector<8x64xbf16>
    %cst_85 = arith.constant dense<0.000000e+00> : vector<8x64xf32>
    %137 = tpu.matmul %134, %136, %cst_85 {dimension_numbers = #tpu.dot_dimension_numbers<[1], [0], [0], [1], [0, 0, 1, 1], [], []>} : vector<8x8xbf16>, vector<8x64xbf16>, vector<8x64xf32> -> vector<8x64xf32>
    %c3_86 = arith.constant 3 : index
    %c0_87 = arith.constant 0 : index
    %c0_88 = arith.constant 0 : index
    %138 = vector.load %arg3[%c3_86, %c0_87, %c0_88] : memref<4x1x64xf32, #tpu.memory_space<vmem>>, vector<1x1x64xf32>
    %139 = vector.shape_cast %138 : vector<1x1x64xf32> to vector<1x64xf32>
    %140 = vector.broadcast %139 : vector<1x64xf32> to vector<8x64xf32>
    %141 = arith.addf %137, %140 : vector<8x64xf32>
    %cst_89 = arith.constant 0.000000e+00 : f32
    %142 = vector.broadcast %cst_89 : f32 to vector<8x64xf32>
    %143 = arith.cmpf ogt, %141, %142 : vector<8x64xf32>
    %cst_90 = arith.constant 2.000000e-01 : f32
    %144 = vector.broadcast %cst_90 : f32 to vector<8x64xf32>
    %145 = arith.mulf %144, %141 : vector<8x64xf32>
    %146 = arith.select %143, %141, %145 : vector<8x64xi1>, vector<8x64xf32>
    %147 = arith.truncf %146 : vector<8x64xf32> to vector<8x64xbf16>
    %c3_91 = arith.constant 3 : index
    %c0_92 = arith.constant 0 : index
    %c0_93 = arith.constant 0 : index
    %148 = vector.load %arg4[%c3_91, %c0_92, %c0_93] : memref<4x64x64xbf16, #tpu.memory_space<vmem>>, vector<1x64x64xbf16>
    %149 = vector.shape_cast %148 : vector<1x64x64xbf16> to vector<64x64xbf16>
    %cst_94 = arith.constant dense<0.000000e+00> : vector<8x64xf32>
    %150 = tpu.matmul %147, %149, %cst_94 {dimension_numbers = #tpu.dot_dimension_numbers<[1], [0], [0], [1], [0, 0, 1, 1], [], []>} : vector<8x64xbf16>, vector<64x64xbf16>, vector<8x64xf32> -> vector<8x64xf32>
    %c3_95 = arith.constant 3 : index
    %c0_96 = arith.constant 0 : index
    %c0_97 = arith.constant 0 : index
    %151 = vector.load %arg5[%c3_95, %c0_96, %c0_97] : memref<4x1x64xf32, #tpu.memory_space<vmem>>, vector<1x1x64xf32>
    %152 = vector.shape_cast %151 : vector<1x1x64xf32> to vector<1x64xf32>
    %153 = vector.broadcast %152 : vector<1x64xf32> to vector<8x64xf32>
    %154 = arith.addf %150, %153 : vector<8x64xf32>
    %cst_98 = arith.constant 0.000000e+00 : f32
    %155 = vector.broadcast %cst_98 : f32 to vector<8x64xf32>
    %156 = arith.cmpf ogt, %154, %155 : vector<8x64xf32>
    %cst_99 = arith.constant 2.000000e-01 : f32
    %157 = vector.broadcast %cst_99 : f32 to vector<8x64xf32>
    %158 = arith.mulf %157, %154 : vector<8x64xf32>
    %159 = arith.select %156, %154, %158 : vector<8x64xi1>, vector<8x64xf32>
    %160 = arith.truncf %159 : vector<8x64xf32> to vector<8x64xbf16>
    %c3_100 = arith.constant 3 : index
    %c0_101 = arith.constant 0 : index
    %c0_102 = arith.constant 0 : index
    %161 = vector.load %arg6[%c3_100, %c0_101, %c0_102] : memref<4x64x16xbf16, #tpu.memory_space<vmem>>, vector<1x64x16xbf16>
    %162 = vector.shape_cast %161 : vector<1x64x16xbf16> to vector<64x16xbf16>
    %cst_103 = arith.constant dense<0.000000e+00> : vector<8x16xf32>
    %163 = tpu.matmul %160, %162, %cst_103 {dimension_numbers = #tpu.dot_dimension_numbers<[1], [0], [0], [1], [0, 0, 1, 1], [], []>} : vector<8x64xbf16>, vector<64x16xbf16>, vector<8x16xf32> -> vector<8x16xf32>
    %c3_104 = arith.constant 3 : index
    %c0_105 = arith.constant 0 : index
    %c0_106 = arith.constant 0 : index
    %164 = vector.load %arg7[%c3_104, %c0_105, %c0_106] : memref<4x1x16xf32, #tpu.memory_space<vmem>>, vector<1x1x16xf32>
    %165 = vector.shape_cast %164 : vector<1x1x16xf32> to vector<1x16xf32>
    %166 = vector.broadcast %165 : vector<1x16xf32> to vector<8x16xf32>
    %167 = arith.addf %163, %166 : vector<8x16xf32>
    %168 = vector.extract_strided_slice %167 {offsets = [0, 0], sizes = [8, 8], strides = [1, 1]} : vector<8x16xf32> to vector<8x8xf32>
    %169 = vector.extract_strided_slice %167 {offsets = [0, 8], sizes = [8, 8], strides = [1, 1]} : vector<8x16xf32> to vector<8x8xf32>
    %170 = arith.addf %126, %168 : vector<8x8xf32>
    %171 = math.exp %168 : vector<8x8xf32>
    %172 = arith.mulf %171, %129 : vector<8x8xf32>
    %173 = arith.addf %172, %169 : vector<8x8xf32>
    %174 = arith.truncf %173 : vector<8x8xf32> to vector<8x8xbf16>
    %c3_107 = arith.constant 3 : index
    %c0_108 = arith.constant 0 : index
    %c0_109 = arith.constant 0 : index
    %175 = vector.load %arg8[%c3_107, %c0_108, %c0_109] : memref<4x8x8xbf16, #tpu.memory_space<vmem>>, vector<1x8x8xbf16>
    %176 = vector.shape_cast %175 : vector<1x8x8xbf16> to vector<8x8xbf16>
    %177 = vector.shape_cast %174 : vector<8x8xbf16> to vector<1x8x8xbf16>
    tpu.vector_store %arg8[%c3_107, %c0_108, %c0_109], %177 {strides = array<i32>} : memref<4x8x8xbf16, #tpu.memory_space<vmem>>, vector<1x8x8xbf16>,
    %cst_110 = arith.constant dense<0.000000e+00> : vector<8xf32>
    %178 = vector.multi_reduction <add>, %170, %cst_110 [1] : vector<8x8xf32> to vector<8xf32>
    %179 = vector.shape_cast %178 : vector<8xf32> to vector<8x1xf32>
    %c0_111 = arith.constant 0 : index
    %c0_112 = arith.constant 0 : index
    %180 = vector.load %arg10[%c0_111, %c0_112] : memref<8x1xf32, #tpu.memory_space<vmem>>, vector<8x1xf32>
    tpu.vector_store %arg10[%c0_111, %c0_112], %179 {strides = array<i32>} : memref<8x1xf32, #tpu.memory_space<vmem>>, vector<8x1xf32>,
    %181 = arith.mulf %173, %173 : vector<8x8xf32>
    %cst_113 = arith.constant -5.000000e-01 : f32
    %182 = vector.broadcast %cst_113 : f32 to vector<8x8xf32>
    %183 = arith.mulf %182, %181 : vector<8x8xf32>
    %cst_114 = arith.constant 0.918938517 : f32
    %184 = vector.broadcast %cst_114 : f32 to vector<8x8xf32>
    %185 = arith.subf %183, %184 : vector<8x8xf32>
    %cst_115 = arith.constant dense<0.000000e+00> : vector<8xf32>
    %186 = vector.multi_reduction <add>, %185, %cst_115 [1] : vector<8x8xf32> to vector<8xf32>
    %187 = vector.shape_cast %186 : vector<8xf32> to vector<8x1xf32>
    %c0_116 = arith.constant 0 : index
    %c0_117 = arith.constant 0 : index
    %188 = vector.load %arg9[%c0_116, %c0_117] : memref<8x1xf32, #tpu.memory_space<vmem>>, vector<8x1xf32>
    tpu.vector_store %arg9[%c0_116, %c0_117], %187 {strides = array<i32>} : memref<8x1xf32, #tpu.memory_space<vmem>>, vector<8x1xf32>,
    return
  }
  func.func @transform_0(%arg0: i32) -> (i32, i32) {
    %c0_i32 = arith.constant 0 : i32
    %c0_i32_0 = arith.constant 0 : i32
    return %arg0, %c0_i32 : i32, i32
  }
  func.func @transform_1(%arg0: i32) -> (i32, i32, i32) {
    %c0_i32 = arith.constant 0 : i32
    %c0_i32_0 = arith.constant 0 : i32
    %c0_i32_1 = arith.constant 0 : i32
    %c0_i32_2 = arith.constant 0 : i32
    return %c0_i32, %c0_i32_0, %c0_i32_1 : i32, i32, i32
  }
  func.func @transform_2(%arg0: i32) -> (i32, i32, i32) {
    %c0_i32 = arith.constant 0 : i32
    %c0_i32_0 = arith.constant 0 : i32
    %c0_i32_1 = arith.constant 0 : i32
    %c0_i32_2 = arith.constant 0 : i32
    return %c0_i32, %c0_i32_0, %c0_i32_1 : i32, i32, i32
  }
  func.func @transform_3(%arg0: i32) -> (i32, i32, i32) {
    %c0_i32 = arith.constant 0 : i32
    %c0_i32_0 = arith.constant 0 : i32
    %c0_i32_1 = arith.constant 0 : i32
    %c0_i32_2 = arith.constant 0 : i32
    return %c0_i32, %c0_i32_0, %c0_i32_1 : i32, i32, i32
  }
  func.func @transform_4(%arg0: i32) -> (i32, i32, i32) {
    %c0_i32 = arith.constant 0 : i32
    %c0_i32_0 = arith.constant 0 : i32
    %c0_i32_1 = arith.constant 0 : i32
    %c0_i32_2 = arith.constant 0 : i32
    return %c0_i32, %c0_i32_0, %c0_i32_1 : i32, i32, i32
  }
  func.func @transform_5(%arg0: i32) -> (i32, i32, i32) {
    %c0_i32 = arith.constant 0 : i32
    %c0_i32_0 = arith.constant 0 : i32
    %c0_i32_1 = arith.constant 0 : i32
    %c0_i32_2 = arith.constant 0 : i32
    return %c0_i32, %c0_i32_0, %c0_i32_1 : i32, i32, i32
  }
  func.func @transform_6(%arg0: i32) -> (i32, i32, i32) {
    %c0_i32 = arith.constant 0 : i32
    %c0_i32_0 = arith.constant 0 : i32
    %c0_i32_1 = arith.constant 0 : i32
    %c0_i32_2 = arith.constant 0 : i32
    return %c0_i32, %c0_i32_0, %c0_i32_1 : i32, i32, i32
  }
  func.func @transform_7(%arg0: i32) -> (i32, i32, i32) {
    %c0_i32 = arith.constant 0 : i32
    %c0_i32_0 = arith.constant 0 : i32
    %c0_i32_1 = arith.constant 0 : i32
    return %c0_i32, %arg0, %c0_i32_0 : i32, i32, i32
  }
  func.func @transform_8(%arg0: i32) -> (i32, i32) {
    %c0_i32 = arith.constant 0 : i32
    %c0_i32_0 = arith.constant 0 : i32
    return %arg0, %c0_i32 : i32, i32
  }
  func.func @transform_9(%arg0: i32) -> (i32, i32) {
    %c0_i32 = arith.constant 0 : i32
    %c0_i32_0 = arith.constant 0 : i32
    return %arg0, %c0_i32 : i32, i32
  }
}

</mosaic_0001>

<llo_original>
// kernel: _lambda_.1
$region0: #{_lambda_.1}
  #allocation0 [shape = 'u32[]', space=smem, size = 0x4, offset = 0x4, fixed_abs, tag = 'smem constant byte address 0x4 - core index']
  #allocation1 [shape = 'u32[144,128]{1,0:T(1,128)}', space=vmem, size = 0x12000, scoped, tag = 'internal scratch']
  %s0 = inlined_call_operand.vmem [shape: f32[16,8], index: 0, kind: input, shape index: {}]
  %s1 = inlined_call_operand.vmem [shape: bf16[4,8,64], index: 1, kind: input, shape index: {}]
  %s2 = inlined_call_operand.vmem [shape: f32[4,1,64], index: 2, kind: input, shape index: {}]
  %s3 = inlined_call_operand.vmem [shape: bf16[4,64,64], index: 3, kind: input, shape index: {}]
  %s4 = inlined_call_operand.vmem [shape: f32[4,1,64], index: 4, kind: input, shape index: {}]
  %s5 = inlined_call_operand.vmem [shape: bf16[4,64,16], index: 5, kind: input, shape index: {}]
  %s6 = inlined_call_operand.vmem [shape: f32[4,1,16], index: 6, kind: input, shape index: {}]
  %s7 = inlined_call_operand.vmem [shape: bf16[4,16,8], index: 7, kind: output, shape index: {0}]
  %s8 = inlined_call_operand.vmem [shape: f32[16,1], index: 8, kind: output, shape index: {1}]
  %s9 = inlined_call_operand.vmem [shape: f32[16,1], index: 9, kind: output, shape index: {2}]
  %10 = xla_tuple %s7, %s8, %s9
  %s11 = sld [smem:[#allocation0]]
  $region114: #{_lambda_.1} parent=0
    _
  %s13 = ssub.s32 1, %s11
  %s14 = scalar_select 0, %s13, %s11
  $region1: #{_lambda_.1} parent=0
    #allocation2 [shape = 'u8[16384]{0}', space=vmem, size = 0x4000, scoped, tag = 'output window, operand 0']
    loop: start=0, step=1, limit=4
    $region2: #{_lambda_.1} parent=1 // loop_pre_header
      _
    $region3: #{_lambda_.1} parent=1 // loop_header
      %s16 = sphi 0, %s20
      %p17 = scmp.ge.s32.totalorder %s16, 4
      %s26 = sphi 0, %s28
      %s29 = sphi 0, %s26
      %s30 = sphi 0, %s29
      %s46 = sphi 0, %s30
      %s50 = sphi 0, %s50
      %s52 = sphi 0, %s50
      %s53 = sphi 0, %s52
      %s67 = sphi 0, %s53
      %s71 = sphi 0, %s71
      %s73 = sphi 0, %s71
      %s74 = sphi 0, %s73
      %s88 = sphi 0, %s74
      %s92 = sphi 0, %s92
      %s94 = sphi 0, %s92
      %s95 = sphi 0, %s94
      %s109 = sphi 0, %s95
      %s113 = sphi 0, %s113
      %s115 = sphi 0, %s113
      %s116 = sphi 0, %s115
      %s130 = sphi 0, %s116
      %s134 = sphi 0, %s134
      %s136 = sphi 0, %s134
      %s137 = sphi 0, %s136
      %s151 = sphi 0, %s137
      %s155 = sphi 0, %s155
      %s157 = sphi 0, %s155
      %s158 = sphi 0, %s157
      %s172 = sphi 0, %s158
      %s178 = sphi 0, %s180
      %s181 = sphi 0, %s178
      %s182 = sphi 0, %s181
      %s198 = sphi 0, %s182
      %s204 = sphi 0, %s206
      %s207 = sphi 0, %s204
      %s208 = sphi 0, %s207
      %s224 = sphi 0, %s208
      %s230 = sphi 0, %s232
      %s233 = sphi 0, %s230
      %s234 = sphi 0, %s233
      %s250 = sphi 0, %s234
    $region4: #{_lambda_.1} parent=1 // loop_header_branch
      %19 = sbr.rel (%p17) target = $region8
    $region5: #{_lambda_.1} parent=1 // loop_body
      %s21 = ssub.s32 %s16, 1
      %s22 = ssub.s32 %s16, 2
      %s23 = sadd.s32 %s16, 1
      %s24 = ssub.s32 %s16, %s23
      %p25 = scmp.eq.s32.totalorder %s24, 0
      %s27 = sadd.s32 %s26, 1
      %s28 = scalar_select %p25, %s26, %s27
      %p31 = pneg %p25
      %p32 = scmp.eq.s32.totalorder %s16, 1
      %p33 = por %p31, %p32
      %p34 = scmp.ne.s32.totalorder %s26, %s29
      %p35 = scmp.eq.s32.totalorder %s16, 0
      %p36 = por %p34, %p35
      %p37 = scmp.ne.s32.totalorder %s26, %s29
      %p38 = scmp.eq.s32.totalorder %s21, 1
      %p39 = por %p37, %p38
      %p40 = scmp.ne.s32.totalorder %s29, %s30
      %p41 = scmp.eq.s32.totalorder %s21, 0
      %p42 = por %p40, %p41
      %p43 = scmp.ne.s32.totalorder %s29, %s30
      %p44 = scmp.eq.s32.totalorder %s22, 1
      %p45 = por %p43, %p44
      %p47 = scmp.ne.s32.totalorder %s30, %s46
      %p48 = scmp.eq.s32.totalorder %s22, 0
      %p49 = por %p47, %p48
      %s51 = sadd.s32 %s50, 1
      %p54 = scmp.eq.s32.totalorder %s16, 1
      %p55 = scmp.ne.s32.totalorder %s50, %s52
      %p56 = scmp.eq.s32.totalorder %s16, 0
      %p57 = por %p55, %p56
      %p58 = scmp.ne.s32.totalorder %s50, %s52
      %p59 = scmp.eq.s32.totalorder %s21, 1
      %p60 = por %p58, %p59
      %p61 = scmp.ne.s32.totalorder %s52, %s53
      %p62 = scmp.eq.s32.totalorder %s21, 0
      %p63 = por %p61, %p62
      %p64 = scmp.ne.s32.totalorder %s52, %s53
      %p65 = scmp.eq.s32.totalorder %s22, 1
      %p66 = por %p64, %p65
      %p68 = scmp.ne.s32.totalorder %s53, %s67
      %p69 = scmp.eq.s32.totalorder %s22, 0
      %p70 = por %p68, %p69
      %s72 = sadd.s32 %s71, 1
      %p75 = scmp.eq.s32.totalorder %s16, 1
      %p76 = scmp.ne.s32.totalorder %s71, %s73
      %p77 = scmp.eq.s32.totalorder %s16, 0
      %p78 = por %p76, %p77
      %p79 = scmp.ne.s32.totalorder %s71, %s73
      %p80 = scmp.eq.s32.totalorder %s21, 1
      %p81 = por %p79, %p80
      %p82 = scmp.ne.s32.totalorder %s73, %s74
      %p83 = scmp.eq.s32.totalorder %s21, 0
      %p84 = por %p82, %p83
      %p85 = scmp.ne.s32.totalorder %s73, %s74
      %p86 = scmp.eq.s32.totalorder %s22, 1
      %p87 = por %p85, %p86
      %p89 = scmp.ne.s32.totalorder %s74, %s88
      %p90 = scmp.eq.s32.totalorder %s22, 0
      %p91 = por %p89, %p90
      %s93 = sadd.s32 %s92, 1
      %p96 = scmp.eq.s32.totalorder %s16, 1
      %p97 = scmp.ne.s32.totalorder %s92, %s94
      %p98 = scmp.eq.s32.totalorder %s16, 0
      %p99 = por %p97, %p98
      %p100 = scmp.ne.s32.totalorder %s92, %s94
      %p101 = scmp.eq.s32.totalorder %s21, 1
      %p102 = por %p100, %p101
      %p103 = scmp.ne.s32.totalorder %s94, %s95
      %p104 = scmp.eq.s32.totalorder %s21, 0
      %p105 = por %p103, %p104
      %p106 = scmp.ne.s32.totalorder %s94, %s95
      %p107 = scmp.eq.s32.totalorder %s22, 1
      %p108 = por %p106, %p107
      %p110 = scmp.ne.s32.totalorder %s95, %s109
      %p111 = scmp.eq.s32.totalorder %s22, 0
      %p112 = por %p110, %p111
      %s114 = sadd.s32 %s113, 1
      %p117 = scmp.eq.s32.totalorder %s16, 1
      %p118 = scmp.ne.s32.totalorder %s113, %s115
      %p119 = scmp.eq.s32.totalorder %s16, 0
      %p120 = por %p118, %p119
      %p121 = scmp.ne.s32.totalorder %s113, %s115
      %p122 = scmp.eq.s32.totalorder %s21, 1
      %p123 = por %p121, %p122
      %p124 = scmp.ne.s32.totalorder %s115, %s116
      %p125 = scmp.eq.s32.totalorder %s21, 0
      %p126 = por %p124, %p125
      %p127 = scmp.ne.s32.totalorder %s115, %s116
      %p128 = scmp.eq.s32.totalorder %s22, 1
      %p129 = por %p127, %p128
      %p131 = scmp.ne.s32.totalorder %s116, %s130
      %p132 = scmp.eq.s32.totalorder %s22, 0
      %p133 = por %p131, %p132
      %s135 = sadd.s32 %s134, 1
      %p138 = scmp.eq.s32.totalorder %s16, 1
      %p139 = scmp.ne.s32.totalorder %s134, %s136
      %p140 = scmp.eq.s32.totalorder %s16, 0
      %p141 = por %p139, %p140
      %p142 = scmp.ne.s32.totalorder %s134, %s136
      %p143 = scmp.eq.s32.totalorder %s21, 1
      %p144 = por %p142, %p143
      %p145 = scmp.ne.s32.totalorder %s136, %s137
      %p146 = scmp.eq.s32.totalorder %s21, 0
      %p147 = por %p145, %p146
      %p148 = scmp.ne.s32.totalorder %s136, %s137
      %p149 = scmp.eq.s32.totalorder %s22, 1
      %p150 = por %p148, %p149
      %p152 = scmp.ne.s32.totalorder %s137, %s151
      %p153 = scmp.eq.s32.totalorder %s22, 0
      %p154 = por %p152, %p153
      %s156 = sadd.s32 %s155, 1
      %p159 = scmp.eq.s32.totalorder %s16, 1
      %p160 = scmp.ne.s32.totalorder %s155, %s157
      %p161 = scmp.eq.s32.totalorder %s16, 0
      %p162 = por %p160, %p161
      %p163 = scmp.ne.s32.totalorder %s155, %s157
      %p164 = scmp.eq.s32.totalorder %s21, 1
      %p165 = por %p163, %p164
      %p166 = scmp.ne.s32.totalorder %s157, %s158
      %p167 = scmp.eq.s32.totalorder %s21, 0
      %p168 = por %p166, %p167
      %p169 = scmp.ne.s32.totalorder %s157, %s158
      %p170 = scmp.eq.s32.totalorder %s22, 1
      %p171 = por %p169, %p170
      %p173 = scmp.ne.s32.totalorder %s158, %s172
      %p174 = scmp.eq.s32.totalorder %s22, 0
      %p175 = por %p173, %p174
      %s176 = ssub.s32 %s16, %s23
      %p177 = scmp.eq.s32.totalorder %s176, 0
      %s179 = sadd.s32 %s178, 1
      %s180 = scalar_select %p177, %s178, %s179
      %p183 = pneg %p177
      %p184 = scmp.eq.s32.totalorder %s16, 1
      %p185 = por %p183, %p184
      %p186 = scmp.ne.s32.totalorder %s178, %s181
      %p187 = scmp.eq.s32.totalorder %s16, 0
      %p188 = por %p186, %p187
      %p189 = scmp.ne.s32.totalorder %s178, %s181
      %p190 = scmp.eq.s32.totalorder %s21, 1
      %p191 = por %p189, %p190
      %p192 = scmp.ne.s32.totalorder %s181, %s182
      %p193 = scmp.eq.s32.totalorder %s21, 0
      %p194 = por %p192, %p193
      %p195 = scmp.ne.s32.totalorder %s181, %s182
      %p196 = scmp.eq.s32.totalorder %s22, 1
      %p197 = por %p195, %p196
      %p199 = scmp.ne.s32.totalorder %s182, %s198
      %p200 = scmp.eq.s32.totalorder %s22, 0
      %p201 = por %p199, %p200
      %s202 = ssub.s32 %s16, %s23
      %p203 = scmp.eq.s32.totalorder %s202, 0
      %s205 = sadd.s32 %s204, 1
      %s206 = scalar_select %p203, %s204, %s205
      %p209 = pneg %p203
      %p210 = scmp.eq.s32.totalorder %s16, 1
      %p211 = por %p209, %p210
      %p212 = scmp.ne.s32.totalorder %s204, %s207
      %p213 = scmp.eq.s32.totalorder %s16, 0
      %p214 = por %p212, %p213
      %p215 = scmp.ne.s32.totalorder %s204, %s207
      %p216 = scmp.eq.s32.totalorder %s21, 1
      %p217 = por %p215, %p216
      %p218 = scmp.ne.s32.totalorder %s207, %s208
      %p219 = scmp.eq.s32.totalorder %s21, 0
      %p220 = por %p218, %p219
      %p221 = scmp.ne.s32.totalorder %s207, %s208
      %p222 = scmp.eq.s32.totalorder %s22, 1
      %p223 = por %p221, %p222
      %p225 = scmp.ne.s32.totalorder %s208, %s224
      %p226 = scmp.eq.s32.totalorder %s22, 0
      %p227 = por %p225, %p226
      %s228 = ssub.s32 %s16, %s23
      %p229 = scmp.eq.s32.totalorder %s228, 0
      %s231 = sadd.s32 %s230, 1
      %s232 = scalar_select %p229, %s230, %s231
      %p235 = pneg %p229
      %p236 = scmp.eq.s32.totalorder %s16, 1
      %p237 = por %p235, %p236
      %p238 = scmp.ne.s32.totalorder %s230, %s233
      %p239 = scmp.eq.s32.totalorder %s16, 0
      %p240 = por %p238, %p239
      %p241 = scmp.ne.s32.totalorder %s230, %s233
      %p242 = scmp.eq.s32.totalorder %s21, 1
      %p243 = por %p241, %p242
      %p244 = scmp.ne.s32.totalorder %s233, %s234
      %p245 = scmp.eq.s32.totalorder %s21, 0
      %p246 = por %p244, %p245
      %p247 = scmp.ne.s32.totalorder %s233, %s234
      %p248 = scmp.eq.s32.totalorder %s22, 1
      %p249 = por %p247, %p248
      %p251 = scmp.ne.s32.totalorder %s234, %s250
      %p252 = scmp.eq.s32.totalorder %s22, 0
      %p253 = por %p251, %p252
      %p254 = scmp.le.s32.totalorder 1, %s16
      %p255 = scmp.lt.s32.totalorder %s16, 3
      %p256 = pnand %p254, %p255
      %p257 = pneg %p256
      // Predicated region
      $region9: #{_lambda_.1} parent=5 // pred_check
        _
      $region10: #{_lambda_.1} parent=5 // pred_check_branch
        %259 = sbr.rel (%p256) target = $region12
      $region11: #{_lambda_.1} parent=5 // pred_region
        %s260 = ssub.s32 %s16, 1
        // Predicated region
        $region13: #{_lambda_.1} parent=11 // pred_check
          %p261 = pneg %p63
        $region14: #{_lambda_.1} parent=11 // pred_check_branch
          %263 = sbr.rel (%p261) target = $region16
        $region15: #{_lambda_.1} parent=11 // pred_region
          _
        $region16: #{_lambda_.1} parent=11 // pred_fallthru
          _
        // Predicated region
        $region17: #{_lambda_.1} parent=11 // pred_check
          %p264 = pneg %p84
        $region18: #{_lambda_.1} parent=11 // pred_check_branch
          %266 = sbr.rel (%p264) target = $region20
        $region19: #{_lambda_.1} parent=11 // pred_region
          _
        $region20: #{_lambda_.1} parent=11 // pred_fallthru
          _
        // Predicated region
        $region21: #{_lambda_.1} parent=11 // pred_check
          %p267 = pneg %p105
        $region22: #{_lambda_.1} parent=11 // pred_check_branch
          %269 = sbr.rel (%p267) target = $region24
        $region23: #{_lambda_.1} parent=11 // pred_region
          _
        $region24: #{_lambda_.1} parent=11 // pred_fallthru
          _
        // Predicated region
        $region25: #{_lambda_.1} parent=11 // pred_check
          %p270 = pneg %p126
        $region26: #{_lambda_.1} parent=11 // pred_check_branch
          %272 = sbr.rel (%p270) target = $region28
        $region27: #{_lambda_.1} parent=11 // pred_region
          _
        $region28: #{_lambda_.1} parent=11 // pred_fallthru
          _
        // Predicated region
        $region29: #{_lambda_.1} parent=11 // pred_check
          %p273 = pneg %p147
        $region30: #{_lambda_.1} parent=11 // pred_check_branch
          %275 = sbr.rel (%p273) target = $region32
        $region31: #{_lambda_.1} parent=11 // pred_region
          _
        $region32: #{_lambda_.1} parent=11 // pred_fallthru
          _
        // Predicated region
        $region33: #{_lambda_.1} parent=11 // pred_check
          %p276 = pneg %p168
        $region34: #{_lambda_.1} parent=11 // pred_check_branch
          %278 = sbr.rel (%p276) target = $region36
        $region35: #{_lambda_.1} parent=11 // pred_region
          _
        $region36: #{_lambda_.1} parent=11 // pred_fallthru
          _
      $region12: #{_lambda_.1} parent=5 // pred_fallthru
        _
      %p279 = scmp.lt.s32.totalorder %s16, 2
      // Predicated region
      $region37: #{_lambda_.1} parent=5 // pred_check
        %p280 = pneg %p279
      $region38: #{_lambda_.1} parent=5 // pred_check_branch
        %282 = sbr.rel (%p280) target = $region40
      $region39: #{_lambda_.1} parent=5 // pred_region
        // Predicated region
        $region41: #{_lambda_.1} parent=39 // pred_check
          %p283 = pneg %p36
        $region42: #{_lambda_.1} parent=39 // pred_check_branch
          %285 = sbr.rel (%p283) target = $region44
        $region43: #{_lambda_.1} parent=39 // pred_region
          %p286 = scmp.lt.s32.totalorder %s16, 1
          %s287 = scalar_select %p286, %s16, 1
          %s288 = smul.addr %s287, 8
          %s289 = scalar_lea.vmem %s0, %s288
        $region44: #{_lambda_.1} parent=39 // pred_fallthru
          _
      $region40: #{_lambda_.1} parent=5 // pred_fallthru
        _
      %p290 = scmp.le.s32.totalorder 1, %s16
      %p291 = scmp.lt.s32.totalorder %s16, 3
      %p292 = pnand %p290, %p291
      %p293 = pneg %p292
      // Predicated region
      $region45: #{_lambda_.1} parent=5 // pred_check
        _
      $region46: #{_lambda_.1} parent=5 // pred_check_branch
        %295 = sbr.rel (%p292) target = $region48
      $region47: #{_lambda_.1} parent=5 // pred_region
        %s296 = ssub.s32 %s16, 1
        %p297 = scmp.lt.s32.totalorder %s21, 1
        %s298 = scalar_select %p297, %s21, 1
        %s299 = smul.addr %s298, 8
        %s300 = scalar_lea.vmem %s0, %s299
        %p301 = pneg %p42
        %p302 = pneg %p39
        %p303 = pneg %p63
        %p304 = pneg %p60
        %p305 = pneg %p84
        %p306 = pneg %p81
        %p307 = pneg %p105
        %p308 = pneg %p102
        %p309 = pneg %p126
        %p310 = pneg %p123
        %p311 = pneg %p147
        %p312 = pneg %p144
        %p313 = pneg %p168
        %p314 = pneg %p165
        %p315 = pneg %p194
        %p316 = pneg %p191
        %s317 = sand.u32 %s181, 1
        %s318 = sand.u32 %s181, 1
        %s319 = smul.addr %s318, 16
        %s320 = scalar_lea.vmem [#allocation2], %s319
        %p321 = pneg %p220
        %p322 = pneg %p217
        %p323 = scmp.lt.s32.totalorder %s21, 1
        %s324 = scalar_select %p323, %s21, 1
        %s325 = smul.addr %s324, 8
        %s326 = scalar_lea.vmem %s8, %s325
        %p327 = pneg %p246
        %p328 = pneg %p243
        %p329 = scmp.lt.s32.totalorder %s21, 1
        %s330 = scalar_select %p329, %s21, 1
        %s331 = smul.addr %s330, 8
        %s332 = scalar_lea.vmem %s9, %s331
        %p333 = scmp.lt.s32.totalorder %s21, 1
        %s334 = scalar_select %p333, %s21, 1
        %s335 = smul.addr %s334, 8
        %s336 = scalar_lea.vmem %s0, %s335
        %p337 = scmp.lt.s32.totalorder %s21, 1
        %s338 = scalar_select %p337, %s21, 1
        %s339 = smul.addr %s338, 8
        %s340 = scalar_lea.vmem %s8, %s339
        %p341 = scmp.lt.s32.totalorder %s21, 1
        %s342 = scalar_select %p341, %s21, 1
        %s343 = smul.addr %s342, 8
        %s344 = scalar_lea.vmem %s9, %s343
        %v346 = vld [vmem:[%s336] sm:$0xff]
        %v347 = vpack.c.bf16 %v346, %v346
        %v348 = vld [vmem:[%s1] sm:$0xf]
        %v349 = vld [vmem:[%s2] sm:$0x1]
        %v351 = vlaneseq
        %v352 = vshrl.u32 %v351, 7
        %v353 = vsub.s32 0, %v352
        %v354 = vrot.slane %v349, %v353
        %vm356 = vcmask 64512
        %v358 = vsel %vm356, %v347, 0
        %vm360 = vcmask 1043456
        %v362 = vsel %vm360, %v348, 0
        %364 = vmatprep.subr.bf16.mxu0 0
        %365 = vmatpush1.bf16.msra.mxu0 %v362
        %366 = vmatprep.subr.bf16.mxu0 0
        %367 = vmatpush1.bf16.msra.mxu0 0
        %368 = vmatprep.subr.bf16.mxu0 0
        %369 = vmatpush1.bf16.msra.mxu0 0
        %370 = vmatprep.subr.bf16.mxu0 0
        %371 = vmatpush1.bf16.msra.mxu0 0
        %372 = vmatprep.subr.bf16.mxu0 0
        %373 = vmatpush1.bf16.msra.mxu0 0
        %374 = vmatprep.subr.bf16.mxu0 0
        %375 = vmatpush1.bf16.msra.mxu0 0
        %376 = vmatprep.subr.bf16.mxu0 0
        %377 = vmatpush1.bf16.msra.mxu0 0
        %378 = vmatprep.subr.bf16.mxu0 0
        %379 = vmatpush1.bf16.msra.mxu0 0
        %380 = vmatprep.subr.bf16.mxu0 0
        %381 = vmatpush1.bf16.msra.mxu0 0
        %382 = vmatprep.subr.bf16.mxu0 0
        %383 = vmatpush1.bf16.msra.mxu0 0
        %384 = vmatprep.subr.bf16.mxu0 0
        %385 = vmatpush1.bf16.msra.mxu0 0
        %386 = vmatprep.subr.bf16.mxu0 0
        %387 = vmatpush1.bf16.msra.mxu0 0
        %388 = vmatprep.subr.bf16.mxu0 0
        %389 = vmatpush1.bf16.msra.mxu0 0
        %390 = vmatprep.subr.bf16.mxu0 0
        %391 = vmatpush1.bf16.msra.mxu0 0
        %392 = vmatprep.subr.bf16.mxu0 0
        %393 = vmatpush1.bf16.msra.mxu0 0
        %394 = vmatprep.subr.bf16.mxu0 0
        %395 = vmatpush1.bf16.msra.mxu0 0
        %396 = vmatprep.mubr.bf16.mxu0 0
        %397 = vmatmul.mubr.bf16.gmra.mrb[0].mxu0 %v358
        %v398 = vpop.f32.mrb[0].mxu0
        %v399 = vadd.f32 %v354, %v398
        %v400 = vpop.f32.mrb[0].mxu0
        %v401 = vpop.f32.mrb[0].mxu0
        %v402 = vpop.f32.mrb[0].mxu0
        %403 = vdwg.mxu0
        %vm404 = vcmp.gt.f32.partialorder %v399, 0.0
        %v405 = vmul.f32 %v399, 0.2
        %v406 = vsel %vm404, %v399, %v405
        %v407 = vpack.c.bf16 %v406, %v406
        %v408 = vld [vmem:[%s3] sm:$0xf]
        %v409 = vld [vmem:[%s3 + $0x4] sm:$0xf]
        %v410 = vld [vmem:[%s3 + $0x8] sm:$0xf]
        %v411 = vld [vmem:[%s3 + $0xc] sm:$0xf]
        %v412 = vld [vmem:[%s3 + $0x10] sm:$0xf]
        %v413 = vld [vmem:[%s3 + $0x14] sm:$0xf]
        %v414 = vld [vmem:[%s3 + $0x18] sm:$0xf]
        %v415 = vld [vmem:[%s3 + $0x1c] sm:$0xf]
        %v416 = vld [vmem:[%s4] sm:$0x1]
        %v418 = vlaneseq
        %v419 = vshrl.u32 %v418, 7
        %v420 = vsub.s32 0, %v419
        %v421 = vrot.slane %v416, %v420
        %v431 = vunpack.c.l.b16 %v408
        %v432 = vunpack.c.l.b16 %v409
        %v433 = vunpack.c.l.b16 %v410
        %v434 = vunpack.c.l.b16 %v411
        %v435 = vunpack.c.l.b16 %v412
        %v436 = vunpack.c.l.b16 %v413
        %v437 = vunpack.c.l.b16 %v414
        %v438 = vunpack.c.l.b16 %v415
        %v439 = vpack.c.b16 %v432, %v431
        %v440 = vpack.c.b16 %v434, %v433
        %v441 = vpack.c.b16 %v436, %v435
        %v442 = vpack.c.b16 %v438, %v437
        %vm447 = vcmask 523264
        %v449 = vsel %vm447, %v407, 0
        %451 = vmatprep.subr.bf16.mxu0 0
        %452 = vmatpush1.bf16.msra.mxu0 %v439
        %453 = vmatprep.subr.bf16.mxu0 0
        %454 = vmatpush1.bf16.msra.mxu0 %v440
        %455 = vmatprep.subr.bf16.mxu0 0
        %456 = vmatpush1.bf16.msra.mxu0 %v441
        %457 = vmatprep.subr.bf16.mxu0 0
        %458 = vmatpush1.bf16.msra.mxu0 %v442
        %459 = vmatprep.subr.bf16.mxu0 0
        %460 = vmatpush1.bf16.msra.mxu0 0
        %461 = vmatprep.subr.bf16.mxu0 0
        %462 = vmatpush1.bf16.msra.mxu0 0
        %463 = vmatprep.subr.bf16.mxu0 0
        %464 = vmatpush1.bf16.msra.mxu0 0
        %465 = vmatprep.subr.bf16.mxu0 0
        %466 = vmatpush1.bf16.msra.mxu0 0
        %467 = vmatprep.subr.bf16.mxu0 0
        %468 = vmatpush1.bf16.msra.mxu0 0
        %469 = vmatprep.subr.bf16.mxu0 0
        %470 = vmatpush1.bf16.msra.mxu0 0
        %471 = vmatprep.subr.bf16.mxu0 0
        %472 = vmatpush1.bf16.msra.mxu0 0
        %473 = vmatprep.subr.bf16.mxu0 0
        %474 = vmatpush1.bf16.msra.mxu0 0
        %475 = vmatprep.subr.bf16.mxu0 0
        %476 = vmatpush1.bf16.msra.mxu0 0
        %477 = vmatprep.subr.bf16.mxu0 0
        %478 = vmatpush1.bf16.msra.mxu0 0
        %479 = vmatprep.subr.bf16.mxu0 0
        %480 = vmatpush1.bf16.msra.mxu0 0
        %481 = vmatprep.subr.bf16.mxu0 0
        %482 = vmatpush1.bf16.msra.mxu0 0
        %483 = vmatprep.mubr.bf16.mxu0 0
        %484 = vmatmul.mubr.bf16.gmra.mrb[0].mxu0 %v449
        %v485 = vpop.f32.mrb[0].mxu0
        %v486 = vadd.f32 %v421, %v485
        %v487 = vpop.f32.mrb[0].mxu0
        %v488 = vpop.f32.mrb[0].mxu0
        %v489 = vpop.f32.mrb[0].mxu0
        %490 = vdwg.mxu0
        %vm491 = vcmp.gt.f32.partialorder %v486, 0.0
        %v492 = vmul.f32 %v486, 0.2
        %v493 = vsel %vm491, %v486, %v492
        %v494 = vpack.c.bf16 %v493, %v493
        %v495 = vld [vmem:[%s5] sm:$0xf]
        %v496 = vld [vmem:[%s5 + $0x4] sm:$0xf]
        %v497 = vld [vmem:[%s5 + $0x8] sm:$0xf]
        %v498 = vld [vmem:[%s5 + $0xc] sm:$0xf]
        %v499 = vld [vmem:[%s5 + $0x10] sm:$0xf]
        %v500 = vld [vmem:[%s5 + $0x14] sm:$0xf]
        %v501 = vld [vmem:[%s5 + $0x18] sm:$0xf]
        %v502 = vld [vmem:[%s5 + $0x1c] sm:$0xf]
        %v503 = vld [vmem:[%s6] sm:$0x1]
        %v505 = vlaneseq
        %v506 = vshrl.u32 %v505, 7
        %v507 = vsub.s32 0, %v506
        %v508 = vrot.slane %v503, %v507
        %v518 = vunpack.c.l.b16 %v495
        %v519 = vunpack.c.l.b16 %v496
        %v520 = vunpack.c.l.b16 %v497
        %v521 = vunpack.c.l.b16 %v498
        %v522 = vunpack.c.l.b16 %v499
        %v523 = vunpack.c.l.b16 %v500
        %v524 = vunpack.c.l.b16 %v501
        %v525 = vunpack.c.l.b16 %v502
        %v526 = vpack.c.b16 %v519, %v518
        %v527 = vpack.c.b16 %v521, %v520
        %v528 = vpack.c.b16 %v523, %v522
        %v529 = vpack.c.b16 %v525, %v524
        %v535 = vsel %vm447, %v494, 0
        %537 = vmatprep.subr.bf16.mxu0 0
        %538 = vmatpush1.bf16.msra.mxu0 %v526
        %539 = vmatprep.subr.bf16.mxu0 0
        %540 = vmatpush1.bf16.msra.mxu0 %v527
        %541 = vmatprep.subr.bf16.mxu0 0
        %542 = vmatpush1.bf16.msra.mxu0 %v528
        %543 = vmatprep.subr.bf16.mxu0 0
        %544 = vmatpush1.bf16.msra.mxu0 %v529
        %545 = vmatprep.subr.bf16.mxu0 0
        %546 = vmatpush1.bf16.msra.mxu0 0
        %547 = vmatprep.subr.bf16.mxu0 0
        %548 = vmatpush1.bf16.msra.mxu0 0
        %549 = vmatprep.subr.bf16.mxu0 0
        %550 = vmatpush1.bf16.msra.mxu0 0
        %551 = vmatprep.subr.bf16.mxu0 0
        %552 = vmatpush1.bf16.msra.mxu0 0
        %553 = vmatprep.subr.bf16.mxu0 0
        %554 = vmatpush1.bf16.msra.mxu0 0
        %555 = vmatprep.subr.bf16.mxu0 0
        %556 = vmatpush1.bf16.msra.mxu0 0
        %557 = vmatprep.subr.bf16.mxu0 0
        %558 = vmatpush1.bf16.msra.mxu0 0
        %559 = vmatprep.subr.bf16.mxu0 0
        %560 = vmatpush1.bf16.msra.mxu0 0
        %561 = vmatprep.subr.bf16.mxu0 0
        %562 = vmatpush1.bf16.msra.mxu0 0
        %563 = vmatprep.subr.bf16.mxu0 0
        %564 = vmatpush1.bf16.msra.mxu0 0
        %565 = vmatprep.subr.bf16.mxu0 0
        %566 = vmatpush1.bf16.msra.mxu0 0
        %567 = vmatprep.subr.bf16.mxu0 0
        %568 = vmatpush1.bf16.msra.mxu0 0
        %569 = vmatprep.mubr.bf16.mxu0 0
        %570 = vmatmul.mubr.bf16.gmra.mrb[0].mxu0 %v535
        %v571 = vpop.f32.mrb[0].mxu0
        %v572 = vadd.f32 %v508, %v571
        %v573 = vpop.f32.mrb[0].mxu0
        %v574 = vpop.f32.mrb[0].mxu0
        %v575 = vpop.f32.mrb[0].mxu0
        %576 = vdwg.mxu0
        %v577 = vadd.f32 %v572, 0.0
        %v578 = vmul.f32 %v572, 1.442695
        %v579 = vpow.pop %v578
        %v580 = vmul.f32 %v579, %v346
        %582 = vrot.lane.b32.xlu0 %v572, 120
        %v583 = vpop.permute.xlu0 %582
        %v585 = vadd.f32 %v580, %v583
        %v586 = vpack.c.bf16 %v585, %v585
        %vm587 = vcmask 60416
        %588 = vst.msk [vmem:[%s320] sm:$0xf] %vm587, %v586
        %s589 = scalar_lea.vmem %s1, 4
        %v590 = vld [vmem:[%s589] sm:$0xf]
        %s591 = scalar_lea.vmem %s2, 1
        %v592 = vld [vmem:[%s591] sm:$0x1]
        %v594 = vlaneseq
        %v595 = vshrl.u32 %v594, 7
        %v596 = vsub.s32 0, %v595
        %v597 = vrot.slane %v592, %v596
        %v600 = vsel %vm356, %v586, 0
        %v603 = vsel %vm360, %v590, 0
        %605 = vmatprep.subr.bf16.mxu0 0
        %606 = vmatpush1.bf16.msra.mxu0 %v603
        %607 = vmatprep.subr.bf16.mxu0 0
        %608 = vmatpush1.bf16.msra.mxu0 0
        %609 = vmatprep.subr.bf16.mxu0 0
        %610 = vmatpush1.bf16.msra.mxu0 0
        %611 = vmatprep.subr.bf16.mxu0 0
        %612 = vmatpush1.bf16.msra.mxu0 0
        %613 = vmatprep.subr.bf16.mxu0 0
        %614 = vmatpush1.bf16.msra.mxu0 0
        %615 = vmatprep.subr.bf16.mxu0 0
        %616 = vmatpush1.bf16.msra.mxu0 0
        %617 = vmatprep.subr.bf16.mxu0 0
        %618 = vmatpush1.bf16.msra.mxu0 0
        %619 = vmatprep.subr.bf16.mxu0 0
        %620 = vmatpush1.bf16.msra.mxu0 0
        %621 = vmatprep.subr.bf16.mxu0 0
        %622 = vmatpush1.bf16.msra.mxu0 0
        %623 = vmatprep.subr.bf16.mxu0 0
        %624 = vmatpush1.bf16.msra.mxu0 0
        %625 = vmatprep.subr.bf16.mxu0 0
        %626 = vmatpush1.bf16.msra.mxu0 0
        %627 = vmatprep.subr.bf16.mxu0 0
        %628 = vmatpush1.bf16.msra.mxu0 0
        %629 = vmatprep.subr.bf16.mxu0 0
        %630 = vmatpush1.bf16.msra.mxu0 0
        %631 = vmatprep.subr.bf16.mxu0 0
        %632 = vmatpush1.bf16.msra.mxu0 0
        %633 = vmatprep.subr.bf16.mxu0 0
        %634 = vmatpush1.bf16.msra.mxu0 0
        %635 = vmatprep.subr.bf16.mxu0 0
        %636 = vmatpush1.bf16.msra.mxu0 0
        %637 = vmatprep.mubr.bf16.mxu0 0
        %638 = vmatmul.mubr.bf16.gmra.mrb[0].mxu0 %v600
        %v639 = vpop.f32.mrb[0].mxu0
        %v640 = vadd.f32 %v597, %v639
        %v641 = vpop.f32.mrb[0].mxu0
        %v642 = vpop.f32.mrb[0].mxu0
        %v643 = vpop.f32.mrb[0].mxu0
        %644 = vdwg.mxu0
        %vm645 = vcmp.gt.f32.partialorder %v640, 0.0
        %v646 = vmul.f32 %v640, 0.2
        %v647 = vsel %vm645, %v640, %v646
        %v648 = vpack.c.bf16 %v647, %v647
        %s649 = scalar_lea.vmem %s3, 32
        %v650 = vld [vmem:[%s649] sm:$0xf]
        %v651 = vld [vmem:[%s649 + $0x4] sm:$0xf]
        %v652 = vld [vmem:[%s649 + $0x8] sm:$0xf]
        %v653 = vld [vmem:[%s649 + $0xc] sm:$0xf]
        %v654 = vld [vmem:[%s649 + $0x10] sm:$0xf]
        %v655 = vld [vmem:[%s649 + $0x14] sm:$0xf]
        %v656 = vld [vmem:[%s649 + $0x18] sm:$0xf]
        %v657 = vld [vmem:[%s649 + $0x1c] sm:$0xf]
        %s658 = scalar_lea.vmem %s4, 1
        %v659 = vld [vmem:[%s658] sm:$0x1]
        %v661 = vlaneseq
        %v662 = vshrl.u32 %v661, 7
        %v663 = vsub.s32 0, %v662
        %v664 = vrot.slane %v659, %v663
        %v674 = vunpack.c.l.b16 %v650
        %v675 = vunpack.c.l.b16 %v651
        %v676 = vunpack.c.l.b16 %v652
        %v677 = vunpack.c.l.b16 %v653
        %v678 = vunpack.c.l.b16 %v654
        %v679 = vunpack.c.l.b16 %v655
        %v680 = vunpack.c.l.b16 %v656
        %v681 = vunpack.c.l.b16 %v657
        %v682 = vpack.c.b16 %v675, %v674
        %v683 = vpack.c.b16 %v677, %v676
        %v684 = vpack.c.b16 %v679, %v678
        %v685 = vpack.c.b16 %v681, %v680
        %v691 = vsel %vm447, %v648, 0
        %693 = vmatprep.subr.bf16.mxu0 0
        %694 = vmatpush1.bf16.msra.mxu0 %v682
        %695 = vmatprep.subr.bf16.mxu0 0
        %696 = vmatpush1.bf16.msra.mxu0 %v683
        %697 = vmatprep.subr.bf16.mxu0 0
        %698 = vmatpush1.bf16.msra.mxu0 %v684
        %699 = vmatprep.subr.bf16.mxu0 0
        %700 = vmatpush1.bf16.msra.mxu0 %v685
        %701 = vmatprep.subr.bf16.mxu0 0
        %702 = vmatpush1.bf16.msra.mxu0 0
        %703 = vmatprep.subr.bf16.mxu0 0
        %704 = vmatpush1.bf16.msra.mxu0 0
        %705 = vmatprep.subr.bf16.mxu0 0
        %706 = vmatpush1.bf16.msra.mxu0 0
        %707 = vmatprep.subr.bf16.mxu0 0
        %708 = vmatpush1.bf16.msra.mxu0 0
        %709 = vmatprep.subr.bf16.mxu0 0
        %710 = vmatpush1.bf16.msra.mxu0 0
        %711 = vmatprep.subr.bf16.mxu0 0
        %712 = vmatpush1.bf16.msra.mxu0 0
        %713 = vmatprep.subr.bf16.mxu0 0
        %714 = vmatpush1.bf16.msra.mxu0 0
        %715 = vmatprep.subr.bf16.mxu0 0
        %716 = vmatpush1.bf16.msra.mxu0 0
        %717 = vmatprep.subr.bf16.mxu0 0
        %718 = vmatpush1.bf16.msra.mxu0 0
        %719 = vmatprep.subr.bf16.mxu0 0
        %720 = vmatpush1.bf16.msra.mxu0 0
        %721 = vmatprep.subr.bf16.mxu0 0
        %722 = vmatpush1.bf16.msra.mxu0 0
        %723 = vmatprep.subr.bf16.mxu0 0
        %724 = vmatpush1.bf16.msra.mxu0 0
        %725 = vmatprep.mubr.bf16.mxu0 0
        %726 = vmatmul.mubr.bf16.gmra.mrb[0].mxu0 %v691
        %v727 = vpop.f32.mrb[0].mxu0
        %v728 = vadd.f32 %v664, %v727
        %v729 = vpop.f32.mrb[0].mxu0
        %v730 = vpop.f32.mrb[0].mxu0
        %v731 = vpop.f32.mrb[0].mxu0
        %732 = vdwg.mxu0
        %vm733 = vcmp.gt.f32.partialorder %v728, 0.0
        %v734 = vmul.f32 %v728, 0.2
        %v735 = vsel %vm733, %v728, %v734
        %v736 = vpack.c.bf16 %v735, %v735
        %s737 = scalar_lea.vmem %s5, 32
        %v738 = vld [vmem:[%s737] sm:$0xf]
        %v739 = vld [vmem:[%s737 + $0x4] sm:$0xf]
        %v740 = vld [vmem:[%s737 + $0x8] sm:$0xf]
        %v741 = vld [vmem:[%s737 + $0xc] sm:$0xf]
        %v742 = vld [vmem:[%s737 + $0x10] sm:$0xf]
        %v743 = vld [vmem:[%s737 + $0x14] sm:$0xf]
        %v744 = vld [vmem:[%s737 + $0x18] sm:$0xf]
        %v745 = vld [vmem:[%s737 + $0x1c] sm:$0xf]
        %s746 = scalar_lea.vmem %s6, 1
        %v747 = vld [vmem:[%s746] sm:$0x1]
        %v749 = vlaneseq
        %v750 = vshrl.u32 %v749, 7
        %v751 = vsub.s32 0, %v750
        %v752 = vrot.slane %v747, %v751
        %v762 = vunpack.c.l.b16 %v738
        %v763 = vunpack.c.l.b16 %v739
        %v764 = vunpack.c.l.b16 %v740
        %v765 = vunpack.c.l.b16 %v741
        %v766 = vunpack.c.l.b16 %v742
        %v767 = vunpack.c.l.b16 %v743
        %v768 = vunpack.c.l.b16 %v744
        %v769 = vunpack.c.l.b16 %v745
        %v770 = vpack.c.b16 %v763, %v762
        %v771 = vpack.c.b16 %v765, %v764
        %v772 = vpack.c.b16 %v767, %v766
        %v773 = vpack.c.b16 %v769, %v768
        %v779 = vsel %vm447, %v736, 0
        %781 = vmatprep.subr.bf16.mxu0 0
        %782 = vmatpush1.bf16.msra.mxu0 %v770
        %783 = vmatprep.subr.bf16.mxu0 0
        %784 = vmatpush1.bf16.msra.mxu0 %v771
        %785 = vmatprep.subr.bf16.mxu0 0
        %786 = vmatpush1.bf16.msra.mxu0 %v772
        %787 = vmatprep.subr.bf16.mxu0 0
        %788 = vmatpush1.bf16.msra.mxu0 %v773
        %789 = vmatprep.subr.bf16.mxu0 0
        %790 = vmatpush1.bf16.msra.mxu0 0
        %791 = vmatprep.subr.bf16.mxu0 0
        %792 = vmatpush1.bf16.msra.mxu0 0
        %793 = vmatprep.subr.bf16.mxu0 0
        %794 = vmatpush1.bf16.msra.mxu0 0
        %795 = vmatprep.subr.bf16.mxu0 0
        %796 = vmatpush1.bf16.msra.mxu0 0
        %797 = vmatprep.subr.bf16.mxu0 0
        %798 = vmatpush1.bf16.msra.mxu0 0
        %799 = vmatprep.subr.bf16.mxu0 0
        %800 = vmatpush1.bf16.msra.mxu0 0
        %801 = vmatprep.subr.bf16.mxu0 0
        %802 = vmatpush1.bf16.msra.mxu0 0
        %803 = vmatprep.subr.bf16.mxu0 0
        %804 = vmatpush1.bf16.msra.mxu0 0
        %805 = vmatprep.subr.bf16.mxu0 0
        %806 = vmatpush1.bf16.msra.mxu0 0
        %807 = vmatprep.subr.bf16.mxu0 0
        %808 = vmatpush1.bf16.msra.mxu0 0
        %809 = vmatprep.subr.bf16.mxu0 0
        %810 = vmatpush1.bf16.msra.mxu0 0
        %811 = vmatprep.subr.bf16.mxu0 0
        %812 = vmatpush1.bf16.msra.mxu0 0
        %813 = vmatprep.mubr.bf16.mxu0 0
        %814 = vmatmul.mubr.bf16.gmra.mrb[0].mxu0 %v779
        %v815 = vpop.f32.mrb[0].mxu0
        %v816 = vadd.f32 %v752, %v815
        %v817 = vpop.f32.mrb[0].mxu0
        %v818 = vpop.f32.mrb[0].mxu0
        %v819 = vpop.f32.mrb[0].mxu0
        %820 = vdwg.mxu0
        %v821 = vadd.f32 %v577, %v816
        %v822 = vmul.f32 %v816, 1.442695
        %v823 = vpow.pop %v822
        %v824 = vmul.f32 %v823, %v585
        %826 = vrot.lane.b32.xlu0 %v816, 120
        %v827 = vpop.permute.xlu0 %826
        %v829 = vadd.f32 %v824, %v827
        %v830 = vpack.c.bf16 %v829, %v829
        %s831 = scalar_lea.vmem %s320, 4 [#allocation2]
        %832 = vst.msk [vmem:[%s831] sm:$0xf] %vm587, %v830
        %s833 = scalar_lea.vmem %s1, 8
        %v834 = vld [vmem:[%s833] sm:$0xf]
        %s835 = scalar_lea.vmem %s2, 2
        %v836 = vld [vmem:[%s835] sm:$0x1]
        %v838 = vlaneseq
        %v839 = vshrl.u32 %v838, 7
        %v840 = vsub.s32 0, %v839
        %v841 = vrot.slane %v836, %v840
        %v844 = vsel %vm356, %v830, 0
        %v847 = vsel %vm360, %v834, 0
        %849 = vmatprep.subr.bf16.mxu0 0
        %850 = vmatpush1.bf16.msra.mxu0 %v847
        %851 = vmatprep.subr.bf16.mxu0 0
        %852 = vmatpush1.bf16.msra.mxu0 0
        %853 = vmatprep.subr.bf16.mxu0 0
        %854 = vmatpush1.bf16.msra.mxu0 0
        %855 = vmatprep.subr.bf16.mxu0 0
        %856 = vmatpush1.bf16.msra.mxu0 0
        %857 = vmatprep.subr.bf16.mxu0 0
        %858 = vmatpush1.bf16.msra.mxu0 0
        %859 = vmatprep.subr.bf16.mxu0 0
        %860 = vmatpush1.bf16.msra.mxu0 0
        %861 = vmatprep.subr.bf16.mxu0 0
        %862 = vmatpush1.bf16.msra.mxu0 0
        %863 = vmatprep.subr.bf16.mxu0 0
        %864 = vmatpush1.bf16.msra.mxu0 0
        %865 = vmatprep.subr.bf16.mxu0 0
        %866 = vmatpush1.bf16.msra.mxu0 0
        %867 = vmatprep.subr.bf16.mxu0 0
        %868 = vmatpush1.bf16.msra.mxu0 0
        %869 = vmatprep.subr.bf16.mxu0 0
        %870 = vmatpush1.bf16.msra.mxu0 0
        %871 = vmatprep.subr.bf16.mxu0 0
        %872 = vmatpush1.bf16.msra.mxu0 0
        %873 = vmatprep.subr.bf16.mxu0 0
        %874 = vmatpush1.bf16.msra.mxu0 0
        %875 = vmatprep.subr.bf16.mxu0 0
        %876 = vmatpush1.bf16.msra.mxu0 0
        %877 = vmatprep.subr.bf16.mxu0 0
        %878 = vmatpush1.bf16.msra.mxu0 0
        %879 = vmatprep.subr.bf16.mxu0 0
        %880 = vmatpush1.bf16.msra.mxu0 0
        %881 = vmatprep.mubr.bf16.mxu0 0
        %882 = vmatmul.mubr.bf16.gmra.mrb[0].mxu0 %v844
        %v883 = vpop.f32.mrb[0].mxu0
        %v884 = vadd.f32 %v841, %v883
        %v885 = vpop.f32.mrb[0].mxu0
        %v886 = vpop.f32.mrb[0].mxu0
        %v887 = vpop.f32.mrb[0].mxu0
        %888 = vdwg.mxu0
        %vm889 = vcmp.gt.f32.partialorder %v884, 0.0
        %v890 = vmul.f32 %v884, 0.2
        %v891 = vsel %vm889, %v884, %v890
        %v892 = vpack.c.bf16 %v891, %v891
        %s893 = scalar_lea.vmem %s3, 64
        %v894 = vld [vmem:[%s893] sm:$0xf]
        %v895 = vld [vmem:[%s893 + $0x4] sm:$0xf]
        %v896 = vld [vmem:[%s893 + $0x8] sm:$0xf]
        %v897 = vld [vmem:[%s893 + $0xc] sm:$0xf]
        %v898 = vld [vmem:[%s893 + $0x10] sm:$0xf]
        %v899 = vld [vmem:[%s893 + $0x14] sm:$0xf]
        %v900 = vld [vmem:[%s893 + $0x18] sm:$0xf]
        %v901 = vld [vmem:[%s893 + $0x1c] sm:$0xf]
        %s902 = scalar_lea.vmem %s4, 2
        %v903 = vld [vmem:[%s902] sm:$0x1]
        %v905 = vlaneseq
        %v906 = vshrl.u32 %v905, 7
        %v907 = vsub.s32 0, %v906
        %v908 = vrot.slane %v903, %v907
        %v918 = vunpack.c.l.b16 %v894
        %v919 = vunpack.c.l.b16 %v895
        %v920 = vunpack.c.l.b16 %v896
        %v921 = vunpack.c.l.b16 %v897
        %v922 = vunpack.c.l.b16 %v898
        %v923 = vunpack.c.l.b16 %v899
        %v924 = vunpack.c.l.b16 %v900
        %v925 = vunpack.c.l.b16 %v901
        %v926 = vpack.c.b16 %v919, %v918
        %v927 = vpack.c.b16 %v921, %v920
        %v928 = vpack.c.b16 %v923, %v922
        %v929 = vpack.c.b16 %v925, %v924
        %v935 = vsel %vm447, %v892, 0
        %937 = vmatprep.subr.bf16.mxu0 0
        %938 = vmatpush1.bf16.msra.mxu0 %v926
        %939 = vmatprep.subr.bf16.mxu0 0
        %940 = vmatpush1.bf16.msra.mxu0 %v927
        %941 = vmatprep.subr.bf16.mxu0 0
        %942 = vmatpush1.bf16.msra.mxu0 %v928
        %943 = vmatprep.subr.bf16.mxu0 0
        %944 = vmatpush1.bf16.msra.mxu0 %v929
        %945 = vmatprep.subr.bf16.mxu0 0
        %946 = vmatpush1.bf16.msra.mxu0 0
        %947 = vmatprep.subr.bf16.mxu0 0
        %948 = vmatpush1.bf16.msra.mxu0 0
        %949 = vmatprep.subr.bf16.mxu0 0
        %950 = vmatpush1.bf16.msra.mxu0 0
        %951 = vmatprep.subr.bf16.mxu0 0
        %952 = vmatpush1.bf16.msra.mxu0 0
        %953 = vmatprep.subr.bf16.mxu0 0
        %954 = vmatpush1.bf16.msra.mxu0 0
        %955 = vmatprep.subr.bf16.mxu0 0
        %956 = vmatpush1.bf16.msra.mxu0 0
        %957 = vmatprep.subr.bf16.mxu0 0
        %958 = vmatpush1.bf16.msra.mxu0 0
        %959 = vmatprep.subr.bf16.mxu0 0
        %960 = vmatpush1.bf16.msra.mxu0 0
        %961 = vmatprep.subr.bf16.mxu0 0
        %962 = vmatpush1.bf16.msra.mxu0 0
        %963 = vmatprep.subr.bf16.mxu0 0
        %964 = vmatpush1.bf16.msra.mxu0 0
        %965 = vmatprep.subr.bf16.mxu0 0
        %966 = vmatpush1.bf16.msra.mxu0 0
        %967 = vmatprep.subr.bf16.mxu0 0
        %968 = vmatpush1.bf16.msra.mxu0 0
        %969 = vmatprep.mubr.bf16.mxu0 0
        %970 = vmatmul.mubr.bf16.gmra.mrb[0].mxu0 %v935
        %v971 = vpop.f32.mrb[0].mxu0
        %v972 = vadd.f32 %v908, %v971
        %v973 = vpop.f32.mrb[0].mxu0
        %v974 = vpop.f32.mrb[0].mxu0
        %v975 = vpop.f32.mrb[0].mxu0
        %976 = vdwg.mxu0
        %vm977 = vcmp.gt.f32.partialorder %v972, 0.0
        %v978 = vmul.f32 %v972, 0.2
        %v979 = vsel %vm977, %v972, %v978
        %v980 = vpack.c.bf16 %v979, %v979
        %s981 = scalar_lea.vmem %s5, 64
        %v982 = vld [vmem:[%s981] sm:$0xf]
        %v983 = vld [vmem:[%s981 + $0x4] sm:$0xf]
        %v984 = vld [vmem:[%s981 + $0x8] sm:$0xf]
        %v985 = vld [vmem:[%s981 + $0xc] sm:$0xf]
        %v986 = vld [vmem:[%s981 + $0x10] sm:$0xf]
        %v987 = vld [vmem:[%s981 + $0x14] sm:$0xf]
        %v988 = vld [vmem:[%s981 + $0x18] sm:$0xf]
        %v989 = vld [vmem:[%s981 + $0x1c] sm:$0xf]
        %s990 = scalar_lea.vmem %s6, 2
        %v991 = vld [vmem:[%s990] sm:$0x1]
        %v993 = vlaneseq
        %v994 = vshrl.u32 %v993, 7
        %v995 = vsub.s32 0, %v994
        %v996 = vrot.slane %v991, %v995
        %v1006 = vunpack.c.l.b16 %v982
        %v1007 = vunpack.c.l.b16 %v983
        %v1008 = vunpack.c.l.b16 %v984
        %v1009 = vunpack.c.l.b16 %v985
        %v1010 = vunpack.c.l.b16 %v986
        %v1011 = vunpack.c.l.b16 %v987
        %v1012 = vunpack.c.l.b16 %v988
        %v1013 = vunpack.c.l.b16 %v989
        %v1014 = vpack.c.b16 %v1007, %v1006
        %v1015 = vpack.c.b16 %v1009, %v1008
        %v1016 = vpack.c.b16 %v1011, %v1010
        %v1017 = vpack.c.b16 %v1013, %v1012
        %v1023 = vsel %vm447, %v980, 0
        %1025 = vmatprep.subr.bf16.mxu0 0
        %1026 = vmatpush1.bf16.msra.mxu0 %v1014
        %1027 = vmatprep.subr.bf16.mxu0 0
        %1028 = vmatpush1.bf16.msra.mxu0 %v1015
        %1029 = vmatprep.subr.bf16.mxu0 0
        %1030 = vmatpush1.bf16.msra.mxu0 %v1016
        %1031 = vmatprep.subr.bf16.mxu0 0
        %1032 = vmatpush1.bf16.msra.mxu0 %v1017
        %1033 = vmatprep.subr.bf16.mxu0 0
        %1034 = vmatpush1.bf16.msra.mxu0 0
        %1035 = vmatprep.subr.bf16.mxu0 0
        %1036 = vmatpush1.bf16.msra.mxu0 0
        %1037 = vmatprep.subr.bf16.mxu0 0
        %1038 = vmatpush1.bf16.msra.mxu0 0
        %1039 = vmatprep.subr.bf16.mxu0 0
        %1040 = vmatpush1.bf16.msra.mxu0 0
        %1041 = vmatprep.subr.bf16.mxu0 0
        %1042 = vmatpush1.bf16.msra.mxu0 0
        %1043 = vmatprep.subr.bf16.mxu0 0
        %1044 = vmatpush1.bf16.msra.mxu0 0
        %1045 = vmatprep.subr.bf16.mxu0 0
        %1046 = vmatpush1.bf16.msra.mxu0 0
        %1047 = vmatprep.subr.bf16.mxu0 0
        %1048 = vmatpush1.bf16.msra.mxu0 0
        %1049 = vmatprep.subr.bf16.mxu0 0
        %1050 = vmatpush1.bf16.msra.mxu0 0
        %1051 = vmatprep.subr.bf16.mxu0 0
        %1052 = vmatpush1.bf16.msra.mxu0 0
        %1053 = vmatprep.subr.bf16.mxu0 0
        %1054 = vmatpush1.bf16.msra.mxu0 0
        %1055 = vmatprep.subr.bf16.mxu0 0
        %1056 = vmatpush1.bf16.msra.mxu0 0
        %1057 = vmatprep.mubr.bf16.mxu0 0
        %1058 = vmatmul.mubr.bf16.gmra.mrb[0].mxu0 %v1023
        %v1059 = vpop.f32.mrb[0].mxu0
        %v1060 = vadd.f32 %v996, %v1059
        %v1061 = vpop.f32.mrb[0].mxu0
        %v1062 = vpop.f32.mrb[0].mxu0
        %v1063 = vpop.f32.mrb[0].mxu0
        %1064 = vdwg.mxu0
        %v1065 = vadd.f32 %v821, %v1060
        %v1066 = vmul.f32 %v1060, 1.442695
        %v1067 = vpow.pop %v1066
        %v1068 = vmul.f32 %v1067, %v829
        %1070 = vrot.lane.b32.xlu0 %v1060, 120
        %v1071 = vpop.permute.xlu0 %1070
        %v1073 = vadd.f32 %v1068, %v1071
        %v1074 = vpack.c.bf16 %v1073, %v1073
        %s1075 = scalar_lea.vmem %s320, 8 [#allocation2]
        %1076 = vst.msk [vmem:[%s1075] sm:$0xf] %vm587, %v1074
        %s1077 = scalar_lea.vmem %s1, 12
        %v1078 = vld [vmem:[%s1077] sm:$0xf]
        %s1079 = scalar_lea.vmem %s2, 3
        %v1080 = vld [vmem:[%s1079] sm:$0x1]
        %v1082 = vlaneseq
        %v1083 = vshrl.u32 %v1082, 7
        %v1084 = vsub.s32 0, %v1083
        %v1085 = vrot.slane %v1080, %v1084
        %v1088 = vsel %vm356, %v1074, 0
        %v1091 = vsel %vm360, %v1078, 0
        %1093 = vmatprep.subr.bf16.mxu0 0
        %1094 = vmatpush1.bf16.msra.mxu0 %v1091
        %1095 = vmatprep.subr.bf16.mxu0 0
        %1096 = vmatpush1.bf16.msra.mxu0 0
        %1097 = vmatprep.subr.bf16.mxu0 0
        %1098 = vmatpush1.bf16.msra.mxu0 0
        %1099 = vmatprep.subr.bf16.mxu0 0
        %1100 = vmatpush1.bf16.msra.mxu0 0
        %1101 = vmatprep.subr.bf16.mxu0 0
        %1102 = vmatpush1.bf16.msra.mxu0 0
        %1103 = vmatprep.subr.bf16.mxu0 0
        %1104 = vmatpush1.bf16.msra.mxu0 0
        %1105 = vmatprep.subr.bf16.mxu0 0
        %1106 = vmatpush1.bf16.msra.mxu0 0
        %1107 = vmatprep.subr.bf16.mxu0 0
        %1108 = vmatpush1.bf16.msra.mxu0 0
        %1109 = vmatprep.subr.bf16.mxu0 0
        %1110 = vmatpush1.bf16.msra.mxu0 0
        %1111 = vmatprep.subr.bf16.mxu0 0
        %1112 = vmatpush1.bf16.msra.mxu0 0
        %1113 = vmatprep.subr.bf16.mxu0 0
        %1114 = vmatpush1.bf16.msra.mxu0 0
        %1115 = vmatprep.subr.bf16.mxu0 0
        %1116 = vmatpush1.bf16.msra.mxu0 0
        %1117 = vmatprep.subr.bf16.mxu0 0
        %1118 = vmatpush1.bf16.msra.mxu0 0
        %1119 = vmatprep.subr.bf16.mxu0 0
        %1120 = vmatpush1.bf16.msra.mxu0 0
        %1121 = vmatprep.subr.bf16.mxu0 0
        %1122 = vmatpush1.bf16.msra.mxu0 0
        %1123 = vmatprep.subr.bf16.mxu0 0
        %1124 = vmatpush1.bf16.msra.mxu0 0
        %1125 = vmatprep.mubr.bf16.mxu0 0
        %1126 = vmatmul.mubr.bf16.gmra.mrb[0].mxu0 %v1088
        %v1127 = vpop.f32.mrb[0].mxu0
        %v1128 = vadd.f32 %v1085, %v1127
        %v1129 = vpop.f32.mrb[0].mxu0
        %v1130 = vpop.f32.mrb[0].mxu0
        %v1131 = vpop.f32.mrb[0].mxu0
        %1132 = vdwg.mxu0
        %vm1133 = vcmp.gt.f32.partialorder %v1128, 0.0
        %v1134 = vmul.f32 %v1128, 0.2
        %v1135 = vsel %vm1133, %v1128, %v1134
        %v1136 = vpack.c.bf16 %v1135, %v1135
        %s1137 = scalar_lea.vmem %s3, 96
        %v1138 = vld [vmem:[%s1137] sm:$0xf]
        %v1139 = vld [vmem:[%s1137 + $0x4] sm:$0xf]
        %v1140 = vld [vmem:[%s1137 + $0x8] sm:$0xf]
        %v1141 = vld [vmem:[%s1137 + $0xc] sm:$0xf]
        %v1142 = vld [vmem:[%s1137 + $0x10] sm:$0xf]
        %v1143 = vld [vmem:[%s1137 + $0x14] sm:$0xf]
        %v1144 = vld [vmem:[%s1137 + $0x18] sm:$0xf]
        %v1145 = vld [vmem:[%s1137 + $0x1c] sm:$0xf]
        %s1146 = scalar_lea.vmem %s4, 3
        %v1147 = vld [vmem:[%s1146] sm:$0x1]
        %v1149 = vlaneseq
        %v1150 = vshrl.u32 %v1149, 7
        %v1151 = vsub.s32 0, %v1150
        %v1152 = vrot.slane %v1147, %v1151
        %v1162 = vunpack.c.l.b16 %v1138
        %v1163 = vunpack.c.l.b16 %v1139
        %v1164 = vunpack.c.l.b16 %v1140
        %v1165 = vunpack.c.l.b16 %v1141
        %v1166 = vunpack.c.l.b16 %v1142
        %v1167 = vunpack.c.l.b16 %v1143
        %v1168 = vunpack.c.l.b16 %v1144
        %v1169 = vunpack.c.l.b16 %v1145
        %v1170 = vpack.c.b16 %v1163, %v1162
        %v1171 = vpack.c.b16 %v1165, %v1164
        %v1172 = vpack.c.b16 %v1167, %v1166
        %v1173 = vpack.c.b16 %v1169, %v1168
        %v1179 = vsel %vm447, %v1136, 0
        %1181 = vmatprep.subr.bf16.mxu0 0
        %1182 = vmatpush1.bf16.msra.mxu0 %v1170
        %1183 = vmatprep.subr.bf16.mxu0 0
        %1184 = vmatpush1.bf16.msra.mxu0 %v1171
        %1185 = vmatprep.subr.bf16.mxu0 0
        %1186 = vmatpush1.bf16.msra.mxu0 %v1172
        %1187 = vmatprep.subr.bf16.mxu0 0
        %1188 = vmatpush1.bf16.msra.mxu0 %v1173
        %1189 = vmatprep.subr.bf16.mxu0 0
        %1190 = vmatpush1.bf16.msra.mxu0 0
        %1191 = vmatprep.subr.bf16.mxu0 0
        %1192 = vmatpush1.bf16.msra.mxu0 0
        %1193 = vmatprep.subr.bf16.mxu0 0
        %1194 = vmatpush1.bf16.msra.mxu0 0
        %1195 = vmatprep.subr.bf16.mxu0 0
        %1196 = vmatpush1.bf16.msra.mxu0 0
        %1197 = vmatprep.subr.bf16.mxu0 0
        %1198 = vmatpush1.bf16.msra.mxu0 0
        %1199 = vmatprep.subr.bf16.mxu0 0
        %1200 = vmatpush1.bf16.msra.mxu0 0
        %1201 = vmatprep.subr.bf16.mxu0 0
        %1202 = vmatpush1.bf16.msra.mxu0 0
        %1203 = vmatprep.subr.bf16.mxu0 0
        %1204 = vmatpush1.bf16.msra.mxu0 0
        %1205 = vmatprep.subr.bf16.mxu0 0
        %1206 = vmatpush1.bf16.msra.mxu0 0
        %1207 = vmatprep.subr.bf16.mxu0 0
        %1208 = vmatpush1.bf16.msra.mxu0 0
        %1209 = vmatprep.subr.bf16.mxu0 0
        %1210 = vmatpush1.bf16.msra.mxu0 0
        %1211 = vmatprep.subr.bf16.mxu0 0
        %1212 = vmatpush1.bf16.msra.mxu0 0
        %1213 = vmatprep.mubr.bf16.mxu0 0
        %1214 = vmatmul.mubr.bf16.gmra.mrb[0].mxu0 %v1179
        %v1215 = vpop.f32.mrb[0].mxu0
        %v1216 = vadd.f32 %v1152, %v1215
        %v1217 = vpop.f32.mrb[0].mxu0
        %v1218 = vpop.f32.mrb[0].mxu0
        %v1219 = vpop.f32.mrb[0].mxu0
        %1220 = vdwg.mxu0
        %vm1221 = vcmp.gt.f32.partialorder %v1216, 0.0
        %v1222 = vmul.f32 %v1216, 0.2
        %v1223 = vsel %vm1221, %v1216, %v1222
        %v1224 = vpack.c.bf16 %v1223, %v1223
        %s1225 = scalar_lea.vmem %s5, 96
        %v1226 = vld [vmem:[%s1225] sm:$0xf]
        %v1227 = vld [vmem:[%s1225 + $0x4] sm:$0xf]
        %v1228 = vld [vmem:[%s1225 + $0x8] sm:$0xf]
        %v1229 = vld [vmem:[%s1225 + $0xc] sm:$0xf]
        %v1230 = vld [vmem:[%s1225 + $0x10] sm:$0xf]
        %v1231 = vld [vmem:[%s1225 + $0x14] sm:$0xf]
        %v1232 = vld [vmem:[%s1225 + $0x18] sm:$0xf]
        %v1233 = vld [vmem:[%s1225 + $0x1c] sm:$0xf]
        %s1234 = scalar_lea.vmem %s6, 3
        %v1235 = vld [vmem:[%s1234] sm:$0x1]
        %v1237 = vlaneseq
        %v1238 = vshrl.u32 %v1237, 7
        %v1239 = vsub.s32 0, %v1238
        %v1240 = vrot.slane %v1235, %v1239
        %v1250 = vunpack.c.l.b16 %v1226
        %v1251 = vunpack.c.l.b16 %v1227
        %v1252 = vunpack.c.l.b16 %v1228
        %v1253 = vunpack.c.l.b16 %v1229
        %v1254 = vunpack.c.l.b16 %v1230
        %v1255 = vunpack.c.l.b16 %v1231
        %v1256 = vunpack.c.l.b16 %v1232
        %v1257 = vunpack.c.l.b16 %v1233
        %v1258 = vpack.c.b16 %v1251, %v1250
        %v1259 = vpack.c.b16 %v1253, %v1252
        %v1260 = vpack.c.b16 %v1255, %v1254
        %v1261 = vpack.c.b16 %v1257, %v1256
        %v1267 = vsel %vm447, %v1224, 0
        %1269 = vmatprep.subr.bf16.mxu0 0
        %1270 = vmatpush1.bf16.msra.mxu0 %v1258
        %1271 = vmatprep.subr.bf16.mxu0 0
        %1272 = vmatpush1.bf16.msra.mxu0 %v1259
        %1273 = vmatprep.subr.bf16.mxu0 0
        %1274 = vmatpush1.bf16.msra.mxu0 %v1260
        %1275 = vmatprep.subr.bf16.mxu0 0
        %1276 = vmatpush1.bf16.msra.mxu0 %v1261
        %1277 = vmatprep.subr.bf16.mxu0 0
        %1278 = vmatpush1.bf16.msra.mxu0 0
        %1279 = vmatprep.subr.bf16.mxu0 0
        %1280 = vmatpush1.bf16.msra.mxu0 0
        %1281 = vmatprep.subr.bf16.mxu0 0
        %1282 = vmatpush1.bf16.msra.mxu0 0
        %1283 = vmatprep.subr.bf16.mxu0 0
        %1284 = vmatpush1.bf16.msra.mxu0 0
        %1285 = vmatprep.subr.bf16.mxu0 0
        %1286 = vmatpush1.bf16.msra.mxu0 0
        %1287 = vmatprep.subr.bf16.mxu0 0
        %1288 = vmatpush1.bf16.msra.mxu0 0
        %1289 = vmatprep.subr.bf16.mxu0 0
        %1290 = vmatpush1.bf16.msra.mxu0 0
        %1291 = vmatprep.subr.bf16.mxu0 0
        %1292 = vmatpush1.bf16.msra.mxu0 0
        %1293 = vmatprep.subr.bf16.mxu0 0
        %1294 = vmatpush1.bf16.msra.mxu0 0
        %1295 = vmatprep.subr.bf16.mxu0 0
        %1296 = vmatpush1.bf16.msra.mxu0 0
        %1297 = vmatprep.subr.bf16.mxu0 0
        %1298 = vmatpush1.bf16.msra.mxu0 0
        %1299 = vmatprep.subr.bf16.mxu0 0
        %1300 = vmatpush1.bf16.msra.mxu0 0
        %1301 = vmatprep.mubr.bf16.mxu0 0
        %1302 = vmatmul.mubr.bf16.gmra.mrb[0].mxu0 %v1267
        %v1303 = vpop.f32.mrb[0].mxu0
        %v1304 = vadd.f32 %v1240, %v1303
        %v1305 = vpop.f32.mrb[0].mxu0
        %v1306 = vpop.f32.mrb[0].mxu0
        %v1307 = vpop.f32.mrb[0].mxu0
        %1308 = vdwg.mxu0
        %v1309 = vadd.f32 %v1065, %v1304
        %v1310 = vmul.f32 %v1304, 1.442695
        %v1311 = vpow.pop %v1310
        %v1312 = vmul.f32 %v1311, %v1073
        %1314 = vrot.lane.b32.xlu0 %v1304, 120
        %v1315 = vpop.permute.xlu0 %1314
        %v1317 = vadd.f32 %v1312, %v1315
        %v1318 = vpack.c.bf16 %v1317, %v1317
        %s1319 = scalar_lea.vmem %s320, 12 [#allocation2]
        %1320 = vst.msk [vmem:[%s1319] sm:$0xf] %vm587, %v1318
        %v1321 = vsel %vm356, %v1309, 0.0
        %1322 = vadd.xlane.f32.xlu0 %v1321
        %v1323 = vpop.xlane.xlu0 %1322
        %vm1324 = vcmask 7168
        %1325 = vst.msk [vmem:[%s344] sm:$0xff] %vm1324, %v1323
        %v1326 = vmul.f32 %v1317, %v1317
        %v1327 = vmul.f32 %v1326, -0.5
        %v1328 = vsub.f32 %v1327, 0.9189385
        %v1329 = vsel %vm356, %v1328, 0.0
        %1330 = vadd.xlane.f32.xlu0 %v1329
        %v1331 = vpop.xlane.xlu0 %1330
        %1332 = vst.msk [vmem:[%s340] sm:$0xff] %vm1324, %v1331
        %s1333 = sand.u32 %s181, 1
        %s1334 = sand.u32 %s181, 1
        %s1335 = smul.addr %s1334, 16
        %s1336 = scalar_lea.vmem [#allocation2], %s1335
        %p1337 = scmp.lt.s32.totalorder %s21, 1
        %s1338 = scalar_select %p1337, %s21, 1
        %s1339 = smul.addr %s1338, 8
        %s1340 = scalar_lea.vmem %s8, %s1339
        %p1341 = scmp.lt.s32.totalorder %s21, 1
        %s1342 = scalar_select %p1341, %s21, 1
        %s1343 = smul.addr %s1342, 8
        %s1344 = scalar_lea.vmem %s9, %s1343
        // Predicated region
        $region49: #{_lambda_.1} parent=47 // pred_check
          %p1345 = pneg %p191
        $region50: #{_lambda_.1} parent=47 // pred_check_branch
          %1347 = sbr.rel (%p1345) target = $region52
        $region51: #{_lambda_.1} parent=47 // pred_region
          %s1348 = smul.addr %s21, 4
          %s1349 = scalar_lea.vmem %s7, %s1348
          // Predicated region
          $region53: #{_lambda_.1} parent=51 // pred_check
            _
          $region54: #{_lambda_.1} parent=51 // pred_check_branch
            %1351 = sbr.rel (0) target = $region56
          $region55: #{_lambda_.1} parent=51 // pred_region
            // Predicated region
            $region57: #{_lambda_.1} parent=55 // pred_check
              _
            $region58: #{_lambda_.1} parent=55 // pred_check_branch
              %1353 = sbr.rel target = $region60
            $region59: #{_lambda_.1} parent=55 // pred_region
              // Predicated region
              $region72: #{_lambda_.1} parent=59 // pred_check
                _
              $region73: #{_lambda_.1} parent=59 // pred_check_branch
                %1374 = sbr.rel (0) target = $region75
              $region74: #{_lambda_.1} parent=59 // pred_region
                loop: start=0, step=1, limit=1
                $region76: #{_lambda_.1} parent=74 // loop_pre_header
                  _
                $region77: #{_lambda_.1} parent=74 // loop_header
                  %s1376 = sphi 0, %s1380
                  %p1377 = scmp.ge.s32.totalorder %s1376, 1
                  %s1381 = sphi %s1336, %s1336
                  %s1382 = sphi %s1349, %s1349
                $region78: #{_lambda_.1} parent=74 // loop_header_branch
                  %1379 = sbr.rel (%p1377) target = $region82
                $region79: #{_lambda_.1} parent=74 // loop_body
                  _
                $region80: #{_lambda_.1} parent=74 // loop_footer
                  %s1380 = sadd.s32 1, %s1376
                $region81: #{_lambda_.1} parent=74 // loop_footer_branch
                  %1375 = sbr.rel target = $region77
                $region82: #{_lambda_.1} parent=74 // loop_exit
                  _
                loop: start=0, step=1, limit=1
                $region83: #{_lambda_.1} parent=74 // loop_pre_header
                  _
                $region84: #{_lambda_.1} parent=74 // loop_header
                  %s1385 = sphi 0, %s1389
                  %p1386 = scmp.ge.s32.totalorder %s1385, 1
                  %s1390 = sphi %s1336, %s1336
                  %s1391 = sphi %s1349, %s1349
                $region85: #{_lambda_.1} parent=74 // loop_header_branch
                  %1388 = sbr.rel (%p1386) target = $region89
                $region86: #{_lambda_.1} parent=74 // loop_body
                  %v1392 = vld [vmem:[%s1390] sm:$0xf]
                  %1393 = vst [vmem:[%s1391] sm:$0xf] %v1392
                  %v1394 = vld [vmem:[%s1390 + $0x4] sm:$0xf]
                  %1395 = vst [vmem:[%s1391 + $0x8] sm:$0xf] %v1394
                  %v1396 = vld [vmem:[%s1390 + $0x8] sm:$0xf]
                  %1397 = vst [vmem:[%s1391 + $0x10] sm:$0xf] %v1396
                  %v1398 = vld [vmem:[%s1390 + $0xc] sm:$0xf]
                  %1399 = vst [vmem:[%s1391 + $0x18] sm:$0xf] %v1398
                $region87: #{_lambda_.1} parent=74 // loop_footer
                  %s1389 = sadd.s32 1, %s1385
                $region88: #{_lambda_.1} parent=74 // loop_footer_branch
                  %1384 = sbr.rel target = $region84
                $region89: #{_lambda_.1} parent=74 // loop_exit
                  _
              $region75: #{_lambda_.1} parent=59 // pred_fallthru
                _
            $region60: #{_lambda_.1} parent=55 // pred_fallthru
              _
            // Predicated region
            $region61: #{_lambda_.1} parent=55 // pred_check
              _
            $region62: #{_lambda_.1} parent=55 // pred_check_branch
              %1355 = sbr.rel (0) target = $region64
            $region63: #{_lambda_.1} parent=55 // pred_region
              loop: start=0, step=1, limit=1
              $region65: #{_lambda_.1} parent=63 // loop_pre_header
                _
              $region66: #{_lambda_.1} parent=63 // loop_header
                %s1358 = sphi 0, %s1362
                %p1359 = scmp.ge.s32.totalorder %s1358, 1
                %s1363 = sphi %s1336, %s1336
                %s1364 = sphi %s1349, %s1349
              $region67: #{_lambda_.1} parent=63 // loop_header_branch
                %1361 = sbr.rel (%p1359) target = $region71
              $region68: #{_lambda_.1} parent=63 // loop_body
                %v1365 = vld [vmem:[%s1363] sm:$0xf]
                %1366 = vst [vmem:[%s1364] sm:$0xf] %v1365
                %v1367 = vld [vmem:[%s1363 + $0x4] sm:$0xf]
                %1368 = vst [vmem:[%s1364 + $0x8] sm:$0xf] %v1367
                %v1369 = vld [vmem:[%s1363 + $0x8] sm:$0xf]
                %1370 = vst [vmem:[%s1364 + $0x10] sm:$0xf] %v1369
                %v1371 = vld [vmem:[%s1363 + $0xc] sm:$0xf]
                %1372 = vst [vmem:[%s1364 + $0x18] sm:$0xf] %v1371
              $region69: #{_lambda_.1} parent=63 // loop_footer
                %s1362 = sadd.s32 1, %s1358
              $region70: #{_lambda_.1} parent=63 // loop_footer_branch
                %1357 = sbr.rel target = $region66
              $region71: #{_lambda_.1} parent=63 // loop_exit
                _
            $region64: #{_lambda_.1} parent=55 // pred_fallthru
              _
          $region56: #{_lambda_.1} parent=51 // pred_fallthru
            _
          %1400 = vnop
        $region52: #{_lambda_.1} parent=47 // pred_fallthru
          _
        // Predicated region
        $region90: #{_lambda_.1} parent=47 // pred_check
          %p1401 = pneg %p217
        $region91: #{_lambda_.1} parent=47 // pred_check_branch
          %1403 = sbr.rel (%p1401) target = $region93
        $region92: #{_lambda_.1} parent=47 // pred_region
          _
        $region93: #{_lambda_.1} parent=47 // pred_fallthru
          _
        // Predicated region
        $region94: #{_lambda_.1} parent=47 // pred_check
          %p1404 = pneg %p243
        $region95: #{_lambda_.1} parent=47 // pred_check_branch
          %1406 = sbr.rel (%p1404) target = $region97
        $region96: #{_lambda_.1} parent=47 // pred_region
          _
        $region97: #{_lambda_.1} parent=47 // pred_fallthru
          _
      $region48: #{_lambda_.1} parent=5 // pred_fallthru
        _
      %p1407 = scmp.le.s32.totalorder 2, %s16
      // Predicated region
      $region98: #{_lambda_.1} parent=5 // pred_check
        %p1408 = pneg %p1407
      $region99: #{_lambda_.1} parent=5 // pred_check_branch
        %1410 = sbr.rel (%p1408) target = $region101
      $region100: #{_lambda_.1} parent=5 // pred_region
        %s1411 = ssub.s32 %s16, 2
        // Predicated region
        $region102: #{_lambda_.1} parent=100 // pred_check
          %p1412 = pneg %p197
        $region103: #{_lambda_.1} parent=100 // pred_check_branch
          %1414 = sbr.rel (%p1412) target = $region105
        $region104: #{_lambda_.1} parent=100 // pred_region
          %s1415 = sand.u32 %s182, 1
          %s1416 = sand.u32 %s182, 1
          %s1417 = smul.addr %s1416, 16
          %s1418 = scalar_lea.vmem [#allocation2], %s1417
        $region105: #{_lambda_.1} parent=100 // pred_fallthru
          _
        // Predicated region
        $region106: #{_lambda_.1} parent=100 // pred_check
          %p1419 = pneg %p223
        $region107: #{_lambda_.1} parent=100 // pred_check_branch
          %1421 = sbr.rel (%p1419) target = $region109
        $region108: #{_lambda_.1} parent=100 // pred_region
          %p1422 = scmp.lt.s32.totalorder %s22, 1
          %s1423 = scalar_select %p1422, %s22, 1
          %s1424 = smul.addr %s1423, 8
          %s1425 = scalar_lea.vmem %s8, %s1424
        $region109: #{_lambda_.1} parent=100 // pred_fallthru
          _
        // Predicated region
        $region110: #{_lambda_.1} parent=100 // pred_check
          %p1426 = pneg %p249
        $region111: #{_lambda_.1} parent=100 // pred_check_branch
          %1428 = sbr.rel (%p1426) target = $region113
        $region112: #{_lambda_.1} parent=100 // pred_region
          %p1429 = scmp.lt.s32.totalorder %s22, 1
          %s1430 = scalar_select %p1429, %s22, 1
          %s1431 = smul.addr %s1430, 8
          %s1432 = scalar_lea.vmem %s9, %s1431
        $region113: #{_lambda_.1} parent=100 // pred_fallthru
          _
      $region101: #{_lambda_.1} parent=5 // pred_fallthru
        _
    $region6: #{_lambda_.1} parent=1 // loop_footer
      %s20 = sadd.s32 1, %s16
    $region7: #{_lambda_.1} parent=1 // loop_footer_branch
      %15 = sbr.rel target = $region3
    $region8: #{_lambda_.1} parent=1 // loop_exit
      _

</llo_original>
